<compile_context>
chip_gen: v7x
topology: tpu7x:2x2x1
jax: 0.10.0
libtpu: 0.0.40
codegen_flags: <defaults>
</compile_context>

<pallas_src>
import math
import warnings

import jax
import jax.numpy as jnp
from jax.experimental import pallas as pl
from jax.experimental.pallas import tpu as pltpu


# ----------------------------- chip detection --------------------------------

def _detect_tpu_generation() -> int:
    try:
        kind = jax.devices()[0].device_kind.lower()
    except Exception:                 # no device info: pick the conservative path
        return 0
    if "v7" in kind or "7x" in kind:
        return 7
    for gen in (6, 5, 4):
        if f"v{gen}" in kind:
            return gen
    return 0


_TPU_GEN = _detect_tpu_generation()
_IS_V7X = _TPU_GEN >= 7


# ----------------------------- tuning constants ------------------------------

_SMALL_BYTES = 256 * 1024              # below this, XLA's fused transpose wins
# Per-buffer tile budget: larger on v7x to amortize ~0.35 us/step grid overhead
# against ~3.2 TB/s HBM; 1 MiB (~512x512 f32) already hits ~85% of roofline on
# v5e / v6e.
_TILE_TARGET_BYTES = (2 << 20) if _IS_V7X else (1 << 20)
_MAX_FUSED_TILE_BYTES = 6 << 20        # hard cap for one fused (in + out) tile pair
_TR_CAP = 1024                         # transpose tile edge that becomes the
                                       # OUTPUT lane dim: keep it wide (dense vst)
_VMEM_LIMIT_BYTES = 32 * 1024 * 1024   # explicit; safe on v5e / v6e / v7x
_SHORT_GRID_STEPS = 16                 # below this many steps, try 3-deep pipeline
_EXTRA_BUFFERS = 3


def _round_up(x, m):
    return ((x + m - 1) // m) * m


def _lcm(a, b):
    return a * b // math.gcd(a, b)


def _sublane_align(dtype):
    # f32 -> 8, bf16 -> 16, int8/fp8 -> 32 (packed dtypes pack along sublanes).
    return 8 * max(1, 4 // jnp.dtype(dtype).itemsize)


def _dim_semantics(n_axes):
    """Grid dimension semantics.  v7x has 2 TensorCores per chip and only
    CORE_PARALLEL actually splits the grid across them, so shard the
    independent leading (batch) axis there; single-TC chips use "parallel"."""
    if _IS_V7X and hasattr(pltpu, "CORE_PARALLEL") and n_axes >= 1:
        return (pltpu.CORE_PARALLEL,) + (pltpu.PARALLEL,) * (n_axes - 1)
    return ("parallel",) * n_axes


# ------------------------------ Pallas kernels --------------------------------

def _transpose_kernel(x_ref, o_ref):
    # x_ref: (TR, TC), o_ref: (TC, TR).  Plain 2-D XLU transpose.
    o_ref[...] = x_ref[...].T


def _apply_regroup_kernel(x_ref, o_ref):
    # x_ref: (N, TM*F) slice of x viewed as (B, N, M*F)
    # o_ref: (TM, F*N) slice of the final (B, M, F*N) output
    # out[m, f*N + n] = x[n, m*F + f].  Pure relayout, no arithmetic, so no
    # garbage from masked edge tiles can leak into valid output elements.
    o_ref[...] = x_ref[...].T.reshape(o_ref.shape)


def _revert_regroup_kernel(x_ref, o_ref):
    # x_ref: (TM, F*N) slice of the (B, M, F*N) input
    # o_ref: (N, TM*F) slice of the output viewed as (B, N, M*F)
    # out[n, m*F + f] = x[m, f*N + n] — the exact inverse of the apply kernel.
    n = o_ref.shape[0]
    o_ref[...] = x_ref[...].reshape(-1, n).T


# ------------------ shared wrapper for the fused relayout calls ----------------

def _relayout_call(kernel, x3, out_sds, *, in_block, in_map, out_block, out_map,
                   grid):
    """pallas_call wrapper for the fused lane-dense relayout kernels.

    Tries a 3-deep input pipeline on short grids first, then the default
    double buffer.  Returns None (with a logged warning) if Mosaic refuses to
    lower — the caller then falls back to the generic tiled transpose.
    """
    itemsize = jnp.dtype(x3.dtype).itemsize
    bytes_moved = 2 * x3.size * itemsize
    modes = [None]
    if math.prod(grid) <= _SHORT_GRID_STEPS:
        modes.insert(0, pl.Buffered(_EXTRA_BUFFERS))
    for mode in modes:
        in_spec = (pl.BlockSpec(in_block, in_map, pipeline_mode=mode)
                   if mode is not None else pl.BlockSpec(in_block, in_map))
        try:
            return pl.pallas_call(
                kernel,
                out_shape=out_sds,
                grid_spec=pltpu.PrefetchScalarGridSpec(
                    num_scalar_prefetch=0,
                    grid=grid,
                    in_specs=[in_spec],
                    out_specs=pl.BlockSpec(out_block, out_map),
                ),
                compiler_params=pltpu.CompilerParams(
                    dimension_semantics=_dim_semantics(len(grid)),
                    vmem_limit_bytes=_VMEM_LIMIT_BYTES),
                cost_estimate=pl.CostEstimate(
                    flops=0, transcendentals=0, bytes_accessed=bytes_moved),
            )(x3)
        except Exception as e:                                    # noqa: BLE001
            warnings.warn(
                f"PeriodicityReshape: fused relayout ({kernel.__name__}, "
                f"pipeline_mode={mode}) failed ({type(e).__name__}: {e}); "
                "trying the next code path.", RuntimeWarning)
    return None


# ------------------------ fused lane-dense tiling (N < 128) --------------------

def _fused_tile_m(M, N, F, dtype):
    """Tile size along the main-cycle axis for the fused kernels, or None if no
    legal tiling fits the VMEM budget (caller falls back to the transpose)."""
    itemsize = jnp.dtype(dtype).itemsize
    sub = _sublane_align(dtype)
    # TM must keep the (TM*F)-wide lane dim 128-aligned and the TM sublane dim
    # aligned — unless TM == M (full extent is always legal).
    q = _lcm(sub, 128 // math.gcd(F, 128))
    # Padded VMEM bytes per unit of TM: input tile (N, TM*F) + output tile
    # (TM, F*N) (lane dims rounded to 128, sublane dims to `sub`).
    bytes_per_tm = (_round_up(F * N, 128) + _round_up(N, sub) * F) * itemsize

    if M * bytes_per_tm <= _TILE_TARGET_BYTES:
        return M                                    # whole M axis in one block
    # Raise the budget (up to a hard cap) so very wide F*N shapes still get the
    # lane-dense path with one alignment-group of rows per step.
    budget = max(_TILE_TARGET_BYTES, q * bytes_per_tm)
    if budget > _MAX_FUSED_TILE_BYTES:
        return M if M * bytes_per_tm <= _MAX_FUSED_TILE_BYTES else None
    tm = (min(budget // bytes_per_tm, M) // q) * q
    if tm <= 0:
        return M if M * bytes_per_tm <= _MAX_FUSED_TILE_BYTES else None
    # Prefer an even divisor of M (no masked edge tiles), but never shrink the
    # tile below half of the budgeted size just to get one.
    for cand in range(tm, max(tm // 2, q) - 1, -q):
        if M % cand == 0:
            return cand
    return tm                                       # uneven: edge tiles are masked


def _apply_fused(x, main_cycle):
    """`apply` with lane-dense HBM loads and stores (use when N < 128)."""
    B, T, F = x.shape
    M = main_cycle
    N = T // M
    tm = _fused_tile_m(M, N, F, x.dtype)
    if tm is None:
        return None
    x3 = x.reshape(B, N, M * F)                     # contiguous, free
    grid = (B, pl.cdiv(M, tm))
    return _relayout_call(
        _apply_regroup_kernel, x3,
        jax.ShapeDtypeStruct((B, M, F * N), x.dtype),
        in_block=(pl.Squeezed(), N, tm * F),  in_map=lambda b, m: (b, 0, m),
        out_block=(pl.Squeezed(), tm, F * N), out_map=lambda b, m: (b, m, 0),
        grid=grid)


def _revert_fused(x, main_cycle, n_features):
    """`revert` with lane-dense HBM loads and stores (use when N < 128)."""
    B, M, FN = x.shape
    F = n_features
    N = FN // F
    tm = _fused_tile_m(M, N, F, x.dtype)
    if tm is None:
        return None
    grid = (B, pl.cdiv(M, tm))
    out = _relayout_call(
        _revert_regroup_kernel, x,
        jax.ShapeDtypeStruct((B, N, M * F), x.dtype),
        in_block=(pl.Squeezed(), tm, F * N),  in_map=lambda b, m: (b, m, 0),
        out_block=(pl.Squeezed(), N, tm * F), out_map=lambda b, m: (b, 0, m),
        grid=grid)
    if out is None:
        return None
    return out.reshape(B, N * M, F)                 # contiguous, free


# -------------------- generic tiled batched 2-D transpose ---------------------

def _pick_tile(dim, cap):
    """Tile along one transpose axis: full extent if it fits the cap, otherwise
    a 128-aligned tile (preferring one that divides `dim`)."""
    if dim <= cap:
        return dim                                  # full extent: always legal
    cap128 = max(128, cap - cap % 128)
    for t in range(cap128, 0, -128):
        if dim % t == 0:
            return t
    return cap128                                   # uneven: edge blocks masked


def _transpose_tiled(x3, *, tr_cap=_TR_CAP, tc_cap=None):
    """(B, R, C) -> (B, C, R), tiled batched 2-D transpose on the XLU.

    Asymmetric tiles: `tr` becomes the OUTPUT lane dim, so keep it wide (full
    extent or up to `tr_cap`) for unmasked, lane-dense stores; `tc` is then
    shrunk so one (in + out) tile pair stays inside the per-buffer VMEM budget.
    """
    B, R, C = x3.shape
    itemsize = jnp.dtype(x3.dtype).itemsize
    tr = _pick_tile(R, tr_cap)
    if tc_cap is None:
        tc_cap = max(128, (_TILE_TARGET_BYTES // max(tr * itemsize, 1)) // 128 * 128)
    tc = _pick_tile(C, tc_cap)
    grid = (B, pl.cdiv(R, tr), pl.cdiv(C, tc))
    return pl.pallas_call(
        _transpose_kernel,
        out_shape=jax.ShapeDtypeStruct((B, C, R), x3.dtype),
        grid_spec=pltpu.PrefetchScalarGridSpec(
            num_scalar_prefetch=0,
            grid=grid,
            in_specs=[pl.BlockSpec((pl.Squeezed(), tr, tc),
                                   lambda b, r, c: (b, r, c))],
            out_specs=pl.BlockSpec((pl.Squeezed(), tc, tr),
                                   lambda b, r, c: (b, c, r)),
        ),
        compiler_params=pltpu.CompilerParams(
            dimension_semantics=_dim_semantics(len(grid)),
            vmem_limit_bytes=_VMEM_LIMIT_BYTES),
        cost_estimate=pl.CostEstimate(
            flops=0, transcendentals=0,
            bytes_accessed=2 * B * R * C * itemsize),
    )(x3)


# ------------------------------- dispatchers -----------------------------------

def _apply_small(x, main_cycle, n_features):
    B, T, F = x.shape
    N = T // main_cycle
    return x.reshape(B, N, main_cycle * F).swapaxes(1, 2).reshape(
        B, main_cycle, F * N)


def _revert_small(x, main_cycle, n_features):
    B, M, FN = x.shape
    F = n_features
    N = FN // F
    return x.reshape(B, M * F, N).swapaxes(1, 2).reshape(B, N * M, F)


def _apply_pallas(x, main_cycle, n_features):
    B, T, F = x.shape
    M = main_cycle
    N = T // M
    if N < 128:
        # A plain transpose would store lane-sparse output (last dim = N);
        # fuse the regroup into the kernel so both HBM sides are F*N / TM*F wide.
        out = _apply_fused(x, M)
        if out is not None:
            return out
    y3 = _transpose_tiled(x.reshape(B, N, M * F))   # (B, M*F, N)
    return y3.reshape(B, M, F * N)                  # contiguous, free


def _revert_pallas(x, main_cycle, n_features):
    B, M, FN = x.shape
    F = n_features
    N = FN // F
    if N < 128:
        # Same lane-dense treatment for revert: otherwise the transpose loads
        # are lane-sparse (last dim = N) with sub-512B strided HBM rows.
        out = _revert_fused(x, M, F)
        if out is not None:
            return out
    y3 = _transpose_tiled(x.reshape(B, M * F, N))   # (B, N, M*F)
    return y3.reshape(B, N * M, F)                  # contiguous, free


# ------------------------------ module wrapper ---------------------------------

class PeriodicityReshape:
    """JAX/Pallas port of iTimesformer_Periodicity.PeriodicityReshape (no params)."""

    def __init__(self, main_cycle):
        if main_cycle < 1:
            raise ValueError(f"Invalid main_cycle: {main_cycle}. Must be >= 1.")
        self.main_cycle = int(main_cycle)

    def _assert_seq_len(self, x):
        _, n_steps, _ = x.shape
        if n_steps % self.main_cycle:
            raise ValueError(
                f"Number of steps {n_steps} is not a multiple of the main cycle "
                f"({n_steps}%{self.main_cycle}={n_steps % self.main_cycle}).")

    def apply(self, x, batch_size, n_features):
        self._assert_seq_len(x)
        _, _, F = x.shape
        if F != n_features:
            raise ValueError(f"Expected {n_features} features, got {F}.")
        if x.size * jnp.dtype(x.dtype).itemsize <= _SMALL_BYTES:
            return _apply_small(x, self.main_cycle, n_features)
        return _apply_pallas(x, self.main_cycle, n_features)

    def revert(self, x, batch_size, n_features):
        _, M, FN = x.shape
        if M != self.main_cycle:
            raise ValueError(f"Expected main-cycle dim {self.main_cycle}, got {M}.")
        if FN % n_features:
            raise ValueError(
                f"Last dim {FN} is not a multiple of n_features={n_features}.")
        if x.size * jnp.dtype(x.dtype).itemsize <= _SMALL_BYTES:
            return _revert_small(x, self.main_cycle, n_features)
        return _revert_pallas(x, self.main_cycle, n_features)

    def forward(self, x, n_features, direction):
        batch_size = x.shape[0]
        if direction == "apply":
            return self.apply(x, batch_size, n_features)
        elif direction == "revert":
            return self.revert(x, batch_size, n_features)
        else:
            raise ValueError(
                f'Invalid direction: {direction}. Use "apply" or "revert".')


# ----------------------------- pure-jnp reference -------------------------------

def _ref_apply(x, main_cycle, n_features):
    B = x.shape[0]
    y = x.reshape(B, -1, main_cycle, n_features).transpose(0, 3, 1, 2)
    return y.reshape(B, -1, main_cycle).transpose(0, 2, 1)


def _ref_revert(x, main_cycle, n_features):
    B = x.shape[0]
    y = x.transpose(0, 2, 1).reshape(B, n_features, -1, main_cycle)
    return y.transpose(0, 2, 3, 1).reshape(B, -1, n_features)


# ------------------------------------ main ---------------------------------------

if __name__ == "__main__":
    key = jax.random.PRNGKey(0)
    k1, k2, k3, k4, k5 = jax.random.split(key, 5)

    # ---- test 1: tiny shapes -> jnp fast path ---------------------------------
    B1, F1, M1, T1 = 2, 4, 8, 64
    x1 = jax.random.normal(k1, (B1, T1, F1), dtype=jnp.float32)
    mod1 = PeriodicityReshape(M1)
    y1 = mod1.forward(x1, F1, "apply")
    z1 = jax.block_until_ready(mod1.forward(y1, F1, "revert"))
    assert y1.shape == (B1, M1, F1 * (T1 // M1)), y1.shape
    assert jnp.array_equal(y1, _ref_apply(x1, M1, F1)), "apply (small) mismatch"
    assert jnp.array_equal(z1, x1), "roundtrip (small) mismatch"

    # ---- test 2: fused lane-dense apply AND revert kernels (N < 128) ----------
    B2, F2, M2, N2 = 2, 8, 256, 96
    T2 = M2 * N2
    x2 = jax.random.normal(k2, (B2, T2, F2), dtype=jnp.float32)
    mod2 = PeriodicityReshape(M2)
    y2 = jax.block_until_ready(mod2.forward(x2, F2, "apply"))
    y2_ref = _ref_apply(x2, M2, F2)
    assert y2.shape == y2_ref.shape, (y2.shape, y2_ref.shape)
    assert jnp.array_equal(y2, y2_ref), "apply (fused) mismatch"
    z2 = jax.block_until_ready(mod2.forward(y2, F2, "revert"))
    assert jnp.array_equal(z2, _ref_revert(y2_ref, M2, F2)), "revert (fused) mismatch"
    assert jnp.array_equal(z2, x2), "roundtrip (fused) mismatch"

    # ---- test 3: generic asymmetric-tile transpose path (N >= 128) ------------
    B3, F3, M3, N3 = 2, 4, 192, 128
    T3 = M3 * N3
    x3 = jax.random.normal(k3, (B3, T3, F3), dtype=jnp.float32)
    mod3 = PeriodicityReshape(M3)
    y3 = jax.block_until_ready(mod3.forward(x3, F3, "apply"))
    assert jnp.array_equal(y3, _ref_apply(x3, M3, F3)), "apply (transpose) mismatch"
    z3 = jax.block_until_ready(mod3.forward(y3, F3, "revert"))
    assert jnp.array_equal(z3, x3), "roundtrip (transpose) mismatch"

    # ---- test 4: fused kernels with M not divisible by the tile (edge tiles) --
    B4, F4, M4, N4 = 2, 8, 272, 96          # 272 = 16*17: no "nice" big divisor
    T4 = M4 * N4
    x4 = jax.random.normal(k4, (B4, T4, F4), dtype=jnp.float32)
    mod4 = PeriodicityReshape(M4)
    y4 = jax.block_until_ready(mod4.forward(x4, F4, "apply"))
    assert jnp.array_equal(y4, _ref_apply(x4, M4, F4)), "apply (edge-tile) mismatch"
    z4 = jax.block_until_ready(mod4.forward(y4, F4, "revert"))
    assert jnp.array_equal(z4, x4), "roundtrip (edge-tile) mismatch"

    # ---- test 5: generic transpose with uneven R/C (masked edge blocks) -------
    x5 = jax.random.normal(k5, (2, 200, 136), dtype=jnp.float32)
    y5 = jax.block_until_ready(_transpose_tiled(x5, tr_cap=128, tc_cap=128))
    assert jnp.array_equal(y5, jnp.swapaxes(x5, 1, 2)), "transpose (edge) mismatch"

    print("KERNEL_OK")
</pallas_src>

<mosaic_0001>
module attributes {stable_mosaic.version = 11 : i64} {
  func.func @_apply_regroup_kernel(%arg0: i32, %arg1: i32, %arg2: memref<1x96x1024xf32, #tpu.memory_space<vmem>>, %arg3: memref<1x128x768xf32, #tpu.memory_space<vmem>>) attributes {dimension_semantics = [#tpu.dimension_semantics<parallel>, #tpu.dimension_semantics<parallel>], iteration_bounds = array<i64: 2, 2>, scalar_prefetch = 0 : i64, scratch_operands = 0 : i64, tpu.core_type = #tpu.core_type<tc>, window_params = [{transform_indices = @transform_0, window_bounds = array<i64: 1, 96, 1024>}, {transform_indices = @transform_1, window_bounds = array<i64: 1, 128, 768>}]} {
    %c0 = arith.constant 0 : index
    %c0_0 = arith.constant 0 : index
    %c0_1 = arith.constant 0 : index
    %0 = vector.load %arg2[%c0, %c0_0, %c0_1] : memref<1x96x1024xf32, #tpu.memory_space<vmem>>, vector<1x96x1024xf32>
    %1 = vector.shape_cast %0 : vector<1x96x1024xf32> to vector<96x1024xf32>
    %2 = tpu.transpose %1, [1, 0] : vector<96x1024xf32> -> vector<1024x96xf32>
    %3 = vector.shape_cast %2 : vector<1024x96xf32> to vector<128x768xf32>
    %c0_2 = arith.constant 0 : index
    %c0_3 = arith.constant 0 : index
    %c0_4 = arith.constant 0 : index
    %4 = vector.load %arg3[%c0_2, %c0_3, %c0_4] : memref<1x128x768xf32, #tpu.memory_space<vmem>>, vector<1x128x768xf32>
    %5 = vector.shape_cast %4 : vector<1x128x768xf32> to vector<128x768xf32>
    %6 = vector.shape_cast %3 : vector<128x768xf32> to vector<1x128x768xf32>
    tpu.vector_store %arg3[%c0_2, %c0_3, %c0_4], %6 {strides = array<i32>} : memref<1x128x768xf32, #tpu.memory_space<vmem>>, vector<1x128x768xf32>,
    return
  }
  func.func @transform_0(%arg0: i32, %arg1: i32) -> (i32, i32, i32) {
    %c0_i32 = arith.constant 0 : i32
    %c0_i32_0 = arith.constant 0 : i32
    return %arg0, %c0_i32, %arg1 : i32, i32, i32
  }
  func.func @transform_1(%arg0: i32, %arg1: i32) -> (i32, i32, i32) {
    %c0_i32 = arith.constant 0 : i32
    %c0_i32_0 = arith.constant 0 : i32
    return %arg0, %arg1, %c0_i32 : i32, i32, i32
  }
}

module attributes {stable_mosaic.version = 11 : i64} {
  func.func @_transpose_kernel(%arg0: i32, %arg1: i32, %arg2: i32, %arg3: memref<1x96x2048xf32, #tpu.memory_space<vmem>>, %arg4: memref<1x2048x96xf32, #tpu.memory_space<vmem>>) attributes {dimension_semantics = [#tpu.dimension_semantics<parallel>, #tpu.dimension_semantics<parallel>, #tpu.dimension_semantics<parallel>], iteration_bounds = array<i64: 2, 1, 1>, scalar_prefetch = 0 : i64, scratch_operands = 0 : i64, tpu.core_type = #tpu.core_type<tc>, window_params = [{transform_indices = @transform_0, window_bounds = array<i64: 1, 96, 2048>}, {transform_indices = @transform_1, window_bounds = array<i64: 1, 2048, 96>}]} {
    %c0 = arith.constant 0 : index
    %c0_0 = arith.constant 0 : index
    %c0_1 = arith.constant 0 : index
    %0 = vector.load %arg3[%c0, %c0_0, %c0_1] : memref<1x96x2048xf32, #tpu.memory_space<vmem>>, vector<1x96x2048xf32>
    %1 = vector.shape_cast %0 : vector<1x96x2048xf32> to vector<96x2048xf32>
    %2 = tpu.transpose %1, [1, 0] : vector<96x2048xf32> -> vector<2048x96xf32>
    %c0_2 = arith.constant 0 : index
    %c0_3 = arith.constant 0 : index
    %c0_4 = arith.constant 0 : index
    %3 = vector.load %arg4[%c0_2, %c0_3, %c0_4] : memref<1x2048x96xf32, #tpu.memory_space<vmem>>, vector<1x2048x96xf32>
    %4 = vector.shape_cast %3 : vector<1x2048x96xf32> to vector<2048x96xf32>
    %5 = vector.shape_cast %2 : vector<2048x96xf32> to vector<1x2048x96xf32>
    tpu.vector_store %arg4[%c0_2, %c0_3, %c0_4], %5 {strides = array<i32>} : memref<1x2048x96xf32, #tpu.memory_space<vmem>>, vector<1x2048x96xf32>,
    return
  }
  func.func @transform_0(%arg0: i32, %arg1: i32, %arg2: i32) -> (i32, i32, i32) {
    %c0_i32 = arith.constant 0 : i32
    return %arg0, %arg1, %arg2 : i32, i32, i32
  }
  func.func @transform_1(%arg0: i32, %arg1: i32, %arg2: i32) -> (i32, i32, i32) {
    %c0_i32 = arith.constant 0 : i32
    return %arg0, %arg2, %arg1 : i32, i32, i32
  }
}

</mosaic_0001>

<llo_original>
// kernel: tpu_custom_call.1
$region0: #{tpu_custom_call.1}
  #allocation0 [shape = 'u32[]', space=smem, size = 0x4, offset = 0x4, fixed_abs, tag = 'smem constant byte address 0x4 - core index']
  #allocation1 [shape = 'u32[144,128]{1,0:T(1,128)}', space=vmem, size = 0x12000, scoped, tag = 'internal scratch']
  %s0 = inlined_call_operand.hbm [shape: f32[2,96,2048], index: 0, kind: input, shape index: {}]
  %s1 = inlined_call_operand.vmem [shape: f32[2,2048,96], index: 1, kind: output, shape index: {}]
  %s2 = sld [smem:[#allocation0]]
  $region41: #{tpu_custom_call.1} parent=0
    _
  %s4 = ssub.s32 1, %s2
  %s5 = scalar_select 0, %s4, %s2
  $region1: #{tpu_custom_call.1} parent=0
    #allocation2 [shape = 'u8[1572864]{0}', space=vmem, size = 0x180000, scoped, tag = 'input window, operand 0']
    #allocation3 [shape = 's32[2]{0}', space=sflag, size = 0x8, scoped, tag = 'scoped memory for tpu_custom_call.1']
    %6 = vsyncpa [#allocation3], 0
    %s7 = scalar_lea.sflag [#allocation3], 1
    %8 = vsyncpa %s7, 0
    loop: start=0, step=1, limit=4
    $region2: #{tpu_custom_call.1} parent=1 // loop_pre_header
      _
    $region3: #{tpu_custom_call.1} parent=1 // loop_header
      %s10 = sphi 0, %s14
      %p11 = scmp.ge.s32.totalorder %s10, 4
      %s17 = sphi 0, %s36
      %s18 = sphi 0, %s32
      %s19 = sphi 0, %s28
      %s20 = sphi 0, %s17
      %s21 = sphi 0, %s18
      %s22 = sphi 0, %s19
      %s23 = sphi 0, %s20
      %s24 = sphi 0, %s21
      %s25 = sphi 0, %s22
      %s43 = sphi 0, %s45
      %s46 = sphi 0, %s43
      %s47 = sphi 0, %s46
      %s63 = sphi 0, %s47
      %s73 = sphi 0, %s75
      %s76 = sphi 0, %s73
      %s77 = sphi 0, %s76
      %s93 = sphi 0, %s77
    $region4: #{tpu_custom_call.1} parent=1 // loop_header_branch
      %13 = sbr.rel (%p11) target = $region8
    $region5: #{tpu_custom_call.1} parent=1 // loop_body
      %s15 = ssub.s32 %s10, 1
      %s16 = ssub.s32 %s10, 2
      %s26 = sadd.s32 1, %s19
      %p27 = scmp.ge.s32.totalorder %s26, 1
      %s28 = scalar_select %p27, 0, %s26
      %s29 = sadd.s32 1, %s18
      %s30 = scalar_select %p27, %s29, %s18
      %p31 = scmp.ge.s32.totalorder %s30, 1
      %s32 = scalar_select %p31, 0, %s30
      %s33 = sadd.s32 1, %s17
      %s34 = scalar_select %p31, %s33, %s17
      %p35 = scmp.ge.s32.totalorder %s34, 2
      %s36 = scalar_select %p35, 0, %s34
      %s37 = ssub.s32 %s17, %s36
      %s38 = ssub.s32 %s18, %s32
      %s39 = sor.u32 %s37, %s38
      %s40 = ssub.s32 %s19, %s28
      %s41 = sor.u32 %s39, %s40
      %p42 = scmp.eq.s32.totalorder %s41, 0
      %s44 = sadd.s32 %s43, 1
      %s45 = scalar_select %p42, %s43, %s44
      %p48 = pneg %p42
      %p49 = scmp.eq.s32.totalorder %s10, 1
      %p50 = por %p48, %p49
      %p51 = scmp.ne.s32.totalorder %s43, %s46
      %p52 = scmp.eq.s32.totalorder %s10, 0
      %p53 = por %p51, %p52
      %p54 = scmp.ne.s32.totalorder %s43, %s46
      %p55 = scmp.eq.s32.totalorder %s15, 1
      %p56 = por %p54, %p55
      %p57 = scmp.ne.s32.totalorder %s46, %s47
      %p58 = scmp.eq.s32.totalorder %s15, 0
      %p59 = por %p57, %p58
      %p60 = scmp.ne.s32.totalorder %s46, %s47
      %p61 = scmp.eq.s32.totalorder %s16, 1
      %p62 = por %p60, %p61
      %p64 = scmp.ne.s32.totalorder %s47, %s63
      %p65 = scmp.eq.s32.totalorder %s16, 0
      %p66 = por %p64, %p65
      %s67 = ssub.s32 %s17, %s36
      %s68 = ssub.s32 %s19, %s28
      %s69 = sor.u32 %s67, %s68
      %s70 = ssub.s32 %s18, %s32
      %s71 = sor.u32 %s69, %s70
      %p72 = scmp.eq.s32.totalorder %s71, 0
      %s74 = sadd.s32 %s73, 1
      %s75 = scalar_select %p72, %s73, %s74
      %p78 = pneg %p72
      %p79 = scmp.eq.s32.totalorder %s10, 1
      %p80 = por %p78, %p79
      %p81 = scmp.ne.s32.totalorder %s73, %s76
      %p82 = scmp.eq.s32.totalorder %s10, 0
      %p83 = por %p81, %p82
      %p84 = scmp.ne.s32.totalorder %s73, %s76
      %p85 = scmp.eq.s32.totalorder %s15, 1
      %p86 = por %p84, %p85
      %p87 = scmp.ne.s32.totalorder %s76, %s77
      %p88 = scmp.eq.s32.totalorder %s15, 0
      %p89 = por %p87, %p88
      %p90 = scmp.ne.s32.totalorder %s76, %s77
      %p91 = scmp.eq.s32.totalorder %s16, 1
      %p92 = por %p90, %p91
      %p94 = scmp.ne.s32.totalorder %s77, %s93
      %p95 = scmp.eq.s32.totalorder %s16, 0
      %p96 = por %p94, %p95
      %p97 = scmp.le.s32.totalorder 1, %s10
      %p98 = scmp.lt.s32.totalorder %s10, 3
      %p99 = pnand %p97, %p98
      %p100 = pneg %p99
      // Predicated region
      $region9: #{tpu_custom_call.1} parent=5 // pred_check
        _
      $region10: #{tpu_custom_call.1} parent=5 // pred_check_branch
        %102 = sbr.rel (%p99) target = $region12
      $region11: #{tpu_custom_call.1} parent=5 // pred_region
        %s103 = ssub.s32 %s10, 1
      $region12: #{tpu_custom_call.1} parent=5 // pred_fallthru
        _
      %p104 = scmp.lt.s32.totalorder %s10, 2
      // Predicated region
      $region13: #{tpu_custom_call.1} parent=5 // pred_check
        %p105 = pneg %p104
      $region14: #{tpu_custom_call.1} parent=5 // pred_check_branch
        %107 = sbr.rel (%p105) target = $region16
      $region15: #{tpu_custom_call.1} parent=5 // pred_region
        // Predicated region
        $region17: #{tpu_custom_call.1} parent=15 // pred_check
          %p108 = pneg %p53
        $region18: #{tpu_custom_call.1} parent=15 // pred_check_branch
          %110 = sbr.rel (%p108) target = $region20
        $region19: #{tpu_custom_call.1} parent=15 // pred_region
          %s111 = sand.u32 %s43, 1
          %s112 = scalar_lea.sflag [#allocation3], %s111
          %s113 = sand.u32 %s43, 1
          %s114 = smul.addr %s113, 1536
          %s115 = scalar_lea.vmem [#allocation2], %s114
          %s116 = smul.u32 12, %s18
          %s117 = smul.u32 16, %s19
          %s119 = ssub.s32 24576, 24576
          %120 = vsyncadd %s112, %s119
          %s121 = smul.addr %s116, 16
          %s122 = sadd.s32 %s117, %s121
          %s123 = smul.addr %s17, 192
          %s124 = sadd.s32 %s122, %s123
          %s125 = smul.addr %s124, 128
          %s126 = scalar_lea.hbm %s0, %s125
          %s127 = sshll.u32 %s115, 4
          %s128 = int_to_ptr.vmem [resolvable:$true] %s127
          %133 = dma.hbm_to_vmem [thread:$0]  %s126, 24576, %s128, %s112, 2048, 2048, 128
        $region20: #{tpu_custom_call.1} parent=15 // pred_fallthru
          _
      $region16: #{tpu_custom_call.1} parent=5 // pred_fallthru
        _
      %p134 = scmp.le.s32.totalorder 1, %s10
      %p135 = scmp.lt.s32.totalorder %s10, 3
      %p136 = pnand %p134, %p135
      %p137 = pneg %p136
      // Predicated region
      $region21: #{tpu_custom_call.1} parent=5 // pred_check
        _
      $region22: #{tpu_custom_call.1} parent=5 // pred_check_branch
        %139 = sbr.rel (%p136) target = $region24
      $region23: #{tpu_custom_call.1} parent=5 // pred_region
        %s140 = ssub.s32 %s10, 1
        %s141 = sand.u32 %s46, 1
        %s142 = scalar_lea.sflag [#allocation3], %s141
        %s143 = sand.u32 %s46, 1
        %s144 = smul.addr %s143, 1536
        %s145 = scalar_lea.vmem [#allocation2], %s144
        // Predicated region
        $region25: #{tpu_custom_call.1} parent=23 // pred_check
          %p146 = pneg %p59
        $region26: #{tpu_custom_call.1} parent=23 // pred_check_branch
          %148 = sbr.rel (%p146) target = $region28
        $region27: #{tpu_custom_call.1} parent=23 // pred_region
          %149 = dma.done %s142, 24576
        $region28: #{tpu_custom_call.1} parent=23 // pred_fallthru
          _
        %s150 = sand.u32 %s46, 1
        %s151 = scalar_lea.sflag [#allocation3], %s150
        %s152 = sand.u32 %s46, 1
        %s153 = smul.addr %s152, 1536
        %s154 = scalar_lea.vmem [#allocation2], %s153
        %p155 = pneg %p59
        %p156 = pneg %p56
        %p157 = pneg %p89
        %p158 = pneg %p86
        %s159 = smul.u32 256, %s22
        %p160 = scmp.lt.s32.totalorder %s20, 1
        %s161 = scalar_select %p160, %s20, 1
        %p162 = scmp.lt.s32.totalorder %s159, 255
        %s163 = scalar_select %p162, %s159, 255
        %p164 = scmp.lt.s32.totalorder %s21, 0
        %s165 = scalar_select %p164, %s21, 0
        %s166 = sadd.s32 %s165, %s163
        %s167 = smul.addr %s161, 256
        %s168 = sadd.s32 %s166, %s167
        %s169 = smul.addr %s168, 8
        %s170 = scalar_lea.vmem %s1, %s169
        %s171 = smul.u32 12, %s21
        %s172 = smul.u32 16, %s22
        %s173 = smul.u32 256, %s22
        %p174 = scmp.lt.s32.totalorder %s20, 1
        %s175 = scalar_select %p174, %s20, 1
        %p176 = scmp.lt.s32.totalorder %s173, 255
        %s177 = scalar_select %p176, %s173, 255
        %p178 = scmp.lt.s32.totalorder %s21, 0
        %s179 = scalar_select %p178, %s21, 0
        %s180 = sadd.s32 %s179, %s177
        %s181 = smul.addr %s175, 256
        %s182 = sadd.s32 %s180, %s181
        %s183 = smul.addr %s182, 8
        %s184 = scalar_lea.vmem %s1, %s183
        %s185 = smul.u32 256, %s22
        %v186 = vld [vmem:[%s145] sm:$0xff]
        %v187 = vld [vmem:[%s145 + $0x8] sm:$0xff]
        %v188 = vld [vmem:[%s145 + $0x10] sm:$0xff]
        %v189 = vld [vmem:[%s145 + $0x18] sm:$0xff]
        %v190 = vld [vmem:[%s145 + $0x20] sm:$0xff]
        %v191 = vld [vmem:[%s145 + $0x28] sm:$0xff]
        %v192 = vld [vmem:[%s145 + $0x30] sm:$0xff]
        %v193 = vld [vmem:[%s145 + $0x38] sm:$0xff]
        %v194 = vld [vmem:[%s145 + $0x40] sm:$0xff]
        %v195 = vld [vmem:[%s145 + $0x48] sm:$0xff]
        %v196 = vld [vmem:[%s145 + $0x50] sm:$0xff]
        %v197 = vld [vmem:[%s145 + $0x58] sm:$0xff]
        %v198 = vld [vmem:[%s145 + $0x60] sm:$0xff]
        %v199 = vld [vmem:[%s145 + $0x68] sm:$0xff]
        %v200 = vld [vmem:[%s145 + $0x70] sm:$0xff]
        %v201 = vld [vmem:[%s145 + $0x78] sm:$0xff]
        %v202 = vld [vmem:[%s145 + $0x80] sm:$0xff]
        %v203 = vld [vmem:[%s145 + $0x88] sm:$0xff]
        %v204 = vld [vmem:[%s145 + $0x90] sm:$0xff]
        %v205 = vld [vmem:[%s145 + $0x98] sm:$0xff]
        %v206 = vld [vmem:[%s145 + $0xa0] sm:$0xff]
        %v207 = vld [vmem:[%s145 + $0xa8] sm:$0xff]
        %v208 = vld [vmem:[%s145 + $0xb0] sm:$0xff]
        %v209 = vld [vmem:[%s145 + $0xb8] sm:$0xff]
        %v210 = vld [vmem:[%s145 + $0xc0] sm:$0xff]
        %v211 = vld [vmem:[%s145 + $0xc8] sm:$0xff]
        %v212 = vld [vmem:[%s145 + $0xd0] sm:$0xff]
        %v213 = vld [vmem:[%s145 + $0xd8] sm:$0xff]
        %v214 = vld [vmem:[%s145 + $0xe0] sm:$0xff]
        %v215 = vld [vmem:[%s145 + $0xe8] sm:$0xff]
        %v216 = vld [vmem:[%s145 + $0xf0] sm:$0xff]
        %v217 = vld [vmem:[%s145 + $0xf8] sm:$0xff]
        %v218 = vld [vmem:[%s145 + $0x100] sm:$0xff]
        %v219 = vld [vmem:[%s145 + $0x108] sm:$0xff]
        %v220 = vld [vmem:[%s145 + $0x110] sm:$0xff]
        %v221 = vld [vmem:[%s145 + $0x118] sm:$0xff]
        %v222 = vld [vmem:[%s145 + $0x120] sm:$0xff]
        %v223 = vld [vmem:[%s145 + $0x128] sm:$0xff]
        %v224 = vld [vmem:[%s145 + $0x130] sm:$0xff]
        %v225 = vld [vmem:[%s145 + $0x138] sm:$0xff]
        %v226 = vld [vmem:[%s145 + $0x140] sm:$0xff]
        %v227 = vld [vmem:[%s145 + $0x148] sm:$0xff]
        %v228 = vld [vmem:[%s145 + $0x150] sm:$0xff]
        %v229 = vld [vmem:[%s145 + $0x158] sm:$0xff]
        %v230 = vld [vmem:[%s145 + $0x160] sm:$0xff]
        %v231 = vld [vmem:[%s145 + $0x168] sm:$0xff]
        %v232 = vld [vmem:[%s145 + $0x170] sm:$0xff]
        %v233 = vld [vmem:[%s145 + $0x178] sm:$0xff]
        %v234 = vld [vmem:[%s145 + $0x180] sm:$0xff]
        %v235 = vld [vmem:[%s145 + $0x188] sm:$0xff]
        %v236 = vld [vmem:[%s145 + $0x190] sm:$0xff]
        %v237 = vld [vmem:[%s145 + $0x198] sm:$0xff]
        %v238 = vld [vmem:[%s145 + $0x1a0] sm:$0xff]
        %v239 = vld [vmem:[%s145 + $0x1a8] sm:$0xff]
        %v240 = vld [vmem:[%s145 + $0x1b0] sm:$0xff]
        %v241 = vld [vmem:[%s145 + $0x1b8] sm:$0xff]
        %v242 = vld [vmem:[%s145 + $0x1c0] sm:$0xff]
        %v243 = vld [vmem:[%s145 + $0x1c8] sm:$0xff]
        %v244 = vld [vmem:[%s145 + $0x1d0] sm:$0xff]
        %v245 = vld [vmem:[%s145 + $0x1d8] sm:$0xff]
        %v246 = vld [vmem:[%s145 + $0x1e0] sm:$0xff]
        %v247 = vld [vmem:[%s145 + $0x1e8] sm:$0xff]
        %v248 = vld [vmem:[%s145 + $0x1f0] sm:$0xff]
        %v249 = vld [vmem:[%s145 + $0x1f8] sm:$0xff]
        %v250 = vld [vmem:[%s145 + $0x200] sm:$0xff]
        %v251 = vld [vmem:[%s145 + $0x208] sm:$0xff]
        %v252 = vld [vmem:[%s145 + $0x210] sm:$0xff]
        %v253 = vld [vmem:[%s145 + $0x218] sm:$0xff]
        %v254 = vld [vmem:[%s145 + $0x220] sm:$0xff]
        %v255 = vld [vmem:[%s145 + $0x228] sm:$0xff]
        %v256 = vld [vmem:[%s145 + $0x230] sm:$0xff]
        %v257 = vld [vmem:[%s145 + $0x238] sm:$0xff]
        %v258 = vld [vmem:[%s145 + $0x240] sm:$0xff]
        %v259 = vld [vmem:[%s145 + $0x248] sm:$0xff]
        %v260 = vld [vmem:[%s145 + $0x250] sm:$0xff]
        %v261 = vld [vmem:[%s145 + $0x258] sm:$0xff]
        %v262 = vld [vmem:[%s145 + $0x260] sm:$0xff]
        %v263 = vld [vmem:[%s145 + $0x268] sm:$0xff]
        %v264 = vld [vmem:[%s145 + $0x270] sm:$0xff]
        %v265 = vld [vmem:[%s145 + $0x278] sm:$0xff]
        %v266 = vld [vmem:[%s145 + $0x280] sm:$0xff]
        %v267 = vld [vmem:[%s145 + $0x288] sm:$0xff]
        %v268 = vld [vmem:[%s145 + $0x290] sm:$0xff]
        %v269 = vld [vmem:[%s145 + $0x298] sm:$0xff]
        %v270 = vld [vmem:[%s145 + $0x2a0] sm:$0xff]
        %v271 = vld [vmem:[%s145 + $0x2a8] sm:$0xff]
        %v272 = vld [vmem:[%s145 + $0x2b0] sm:$0xff]
        %v273 = vld [vmem:[%s145 + $0x2b8] sm:$0xff]
        %v274 = vld [vmem:[%s145 + $0x2c0] sm:$0xff]
        %v275 = vld [vmem:[%s145 + $0x2c8] sm:$0xff]
        %v276 = vld [vmem:[%s145 + $0x2d0] sm:$0xff]
        %v277 = vld [vmem:[%s145 + $0x2d8] sm:$0xff]
        %v278 = vld [vmem:[%s145 + $0x2e0] sm:$0xff]
        %v279 = vld [vmem:[%s145 + $0x2e8] sm:$0xff]
        %v280 = vld [vmem:[%s145 + $0x2f0] sm:$0xff]
        %v281 = vld [vmem:[%s145 + $0x2f8] sm:$0xff]
        %v282 = vld [vmem:[%s145 + $0x300] sm:$0xff]
        %v283 = vld [vmem:[%s145 + $0x308] sm:$0xff]
        %v284 = vld [vmem:[%s145 + $0x310] sm:$0xff]
        %v285 = vld [vmem:[%s145 + $0x318] sm:$0xff]
        %v286 = vld [vmem:[%s145 + $0x320] sm:$0xff]
        %v287 = vld [vmem:[%s145 + $0x328] sm:$0xff]
        %v288 = vld [vmem:[%s145 + $0x330] sm:$0xff]
        %v289 = vld [vmem:[%s145 + $0x338] sm:$0xff]
        %v290 = vld [vmem:[%s145 + $0x340] sm:$0xff]
        %v291 = vld [vmem:[%s145 + $0x348] sm:$0xff]
        %v292 = vld [vmem:[%s145 + $0x350] sm:$0xff]
        %v293 = vld [vmem:[%s145 + $0x358] sm:$0xff]
        %v294 = vld [vmem:[%s145 + $0x360] sm:$0xff]
        %v295 = vld [vmem:[%s145 + $0x368] sm:$0xff]
        %v296 = vld [vmem:[%s145 + $0x370] sm:$0xff]
        %v297 = vld [vmem:[%s145 + $0x378] sm:$0xff]
        %v298 = vld [vmem:[%s145 + $0x380] sm:$0xff]
        %v299 = vld [vmem:[%s145 + $0x388] sm:$0xff]
        %v300 = vld [vmem:[%s145 + $0x390] sm:$0xff]
        %v301 = vld [vmem:[%s145 + $0x398] sm:$0xff]
        %v302 = vld [vmem:[%s145 + $0x3a0] sm:$0xff]
        %v303 = vld [vmem:[%s145 + $0x3a8] sm:$0xff]
        %v304 = vld [vmem:[%s145 + $0x3b0] sm:$0xff]
        %v305 = vld [vmem:[%s145 + $0x3b8] sm:$0xff]
        %v306 = vld [vmem:[%s145 + $0x3c0] sm:$0xff]
        %v307 = vld [vmem:[%s145 + $0x3c8] sm:$0xff]
        %v308 = vld [vmem:[%s145 + $0x3d0] sm:$0xff]
        %v309 = vld [vmem:[%s145 + $0x3d8] sm:$0xff]
        %v310 = vld [vmem:[%s145 + $0x3e0] sm:$0xff]
        %v311 = vld [vmem:[%s145 + $0x3e8] sm:$0xff]
        %v312 = vld [vmem:[%s145 + $0x3f0] sm:$0xff]
        %v313 = vld [vmem:[%s145 + $0x3f8] sm:$0xff]
        %v314 = vld [vmem:[%s145 + $0x400] sm:$0xff]
        %v315 = vld [vmem:[%s145 + $0x408] sm:$0xff]
        %v316 = vld [vmem:[%s145 + $0x410] sm:$0xff]
        %v317 = vld [vmem:[%s145 + $0x418] sm:$0xff]
        %v318 = vld [vmem:[%s145 + $0x420] sm:$0xff]
        %v319 = vld [vmem:[%s145 + $0x428] sm:$0xff]
        %v320 = vld [vmem:[%s145 + $0x430] sm:$0xff]
        %v321 = vld [vmem:[%s145 + $0x438] sm:$0xff]
        %v322 = vld [vmem:[%s145 + $0x440] sm:$0xff]
        %v323 = vld [vmem:[%s145 + $0x448] sm:$0xff]
        %v324 = vld [vmem:[%s145 + $0x450] sm:$0xff]
        %v325 = vld [vmem:[%s145 + $0x458] sm:$0xff]
        %v326 = vld [vmem:[%s145 + $0x460] sm:$0xff]
        %v327 = vld [vmem:[%s145 + $0x468] sm:$0xff]
        %v328 = vld [vmem:[%s145 + $0x470] sm:$0xff]
        %v329 = vld [vmem:[%s145 + $0x478] sm:$0xff]
        %v330 = vld [vmem:[%s145 + $0x480] sm:$0xff]
        %v331 = vld [vmem:[%s145 + $0x488] sm:$0xff]
        %v332 = vld [vmem:[%s145 + $0x490] sm:$0xff]
        %v333 = vld [vmem:[%s145 + $0x498] sm:$0xff]
        %v334 = vld [vmem:[%s145 + $0x4a0] sm:$0xff]
        %v335 = vld [vmem:[%s145 + $0x4a8] sm:$0xff]
        %v336 = vld [vmem:[%s145 + $0x4b0] sm:$0xff]
        %v337 = vld [vmem:[%s145 + $0x4b8] sm:$0xff]
        %v338 = vld [vmem:[%s145 + $0x4c0] sm:$0xff]
        %v339 = vld [vmem:[%s145 + $0x4c8] sm:$0xff]
        %v340 = vld [vmem:[%s145 + $0x4d0] sm:$0xff]
        %v341 = vld [vmem:[%s145 + $0x4d8] sm:$0xff]
        %v342 = vld [vmem:[%s145 + $0x4e0] sm:$0xff]
        %v343 = vld [vmem:[%s145 + $0x4e8] sm:$0xff]
        %v344 = vld [vmem:[%s145 + $0x4f0] sm:$0xff]
        %v345 = vld [vmem:[%s145 + $0x4f8] sm:$0xff]
        %v346 = vld [vmem:[%s145 + $0x500] sm:$0xff]
        %v347 = vld [vmem:[%s145 + $0x508] sm:$0xff]
        %v348 = vld [vmem:[%s145 + $0x510] sm:$0xff]
        %v349 = vld [vmem:[%s145 + $0x518] sm:$0xff]
        %v350 = vld [vmem:[%s145 + $0x520] sm:$0xff]
        %v351 = vld [vmem:[%s145 + $0x528] sm:$0xff]
        %v352 = vld [vmem:[%s145 + $0x530] sm:$0xff]
        %v353 = vld [vmem:[%s145 + $0x538] sm:$0xff]
        %v354 = vld [vmem:[%s145 + $0x540] sm:$0xff]
        %v355 = vld [vmem:[%s145 + $0x548] sm:$0xff]
        %v356 = vld [vmem:[%s145 + $0x550] sm:$0xff]
        %v357 = vld [vmem:[%s145 + $0x558] sm:$0xff]
        %v358 = vld [vmem:[%s145 + $0x560] sm:$0xff]
        %v359 = vld [vmem:[%s145 + $0x568] sm:$0xff]
        %v360 = vld [vmem:[%s145 + $0x570] sm:$0xff]
        %v361 = vld [vmem:[%s145 + $0x578] sm:$0xff]
        %v362 = vld [vmem:[%s145 + $0x580] sm:$0xff]
        %v363 = vld [vmem:[%s145 + $0x588] sm:$0xff]
        %v364 = vld [vmem:[%s145 + $0x590] sm:$0xff]
        %v365 = vld [vmem:[%s145 + $0x598] sm:$0xff]
        %v366 = vld [vmem:[%s145 + $0x5a0] sm:$0xff]
        %v367 = vld [vmem:[%s145 + $0x5a8] sm:$0xff]
        %v368 = vld [vmem:[%s145 + $0x5b0] sm:$0xff]
        %v369 = vld [vmem:[%s145 + $0x5b8] sm:$0xff]
        %v370 = vld [vmem:[%s145 + $0x5c0] sm:$0xff]
        %v371 = vld [vmem:[%s145 + $0x5c8] sm:$0xff]
        %v372 = vld [vmem:[%s145 + $0x5d0] sm:$0xff]
        %v373 = vld [vmem:[%s145 + $0x5d8] sm:$0xff]
        %v374 = vld [vmem:[%s145 + $0x5e0] sm:$0xff]
        %v375 = vld [vmem:[%s145 + $0x5e8] sm:$0xff]
        %v376 = vld [vmem:[%s145 + $0x5f0] sm:$0xff]
        %v377 = vld [vmem:[%s145 + $0x5f8] sm:$0xff]
        %378 = vxpose.xlu0.b32.start [1/16] %v186, 128
        %379 = vxpose.xlu0.b32.cont [2/16] %v202, 128
        %380 = vxpose.xlu0.b32.cont [3/16] %v218, 128
        %381 = vxpose.xlu0.b32.cont [4/16] %v234, 128
        %382 = vxpose.xlu0.b32.cont [5/16] %v250, 128
        %383 = vxpose.xlu0.b32.cont [6/16] %v266, 128
        %384 = vxpose.xlu0.b32.cont [7/16] %v282, 128
        %385 = vxpose.xlu0.b32.cont [8/16] %v298, 128
        %386 = vxpose.xlu0.b32.cont [9/16] %v314, 128
        %387 = vxpose.xlu0.b32.cont [10/16] %v330, 128
        %388 = vxpose.xlu0.b32.cont [11/16] %v346, 128
        %389 = vxpose.xlu0.b32.cont [12/16] %v362, 128
        %390 = vxpose.xlu0.b32.cont [13/16] 0.0, 128
        %391 = vxpose.xlu0.b32.cont [14/16] 0.0, 128
        %392 = vxpose.xlu0.b32.cont [15/16] 0.0, 128
        %393 = vxpose.xlu0.b32.end [16/16] 0.0, 128
        %v394 = vpop.trf.xlu0
        %v395 = vpop.trf.xlu0
        %v396 = vpop.trf.xlu0
        %v397 = vpop.trf.xlu0
        %v398 = vpop.trf.xlu0
        %v399 = vpop.trf.xlu0
        %v400 = vpop.trf.xlu0
        %v401 = vpop.trf.xlu0
        %v402 = vpop.trf.xlu0
        %v403 = vpop.trf.xlu0
        %v404 = vpop.trf.xlu0
        %v405 = vpop.trf.xlu0
        %v406 = vpop.trf.xlu0
        %v407 = vpop.trf.xlu0
        %v408 = vpop.trf.xlu0
        %v409 = vpop.trf.xlu0
        %410 = vxpose.xlu0.b32.start [1/16] %v187, 128
        %411 = vxpose.xlu0.b32.cont [2/16] %v203, 128
        %412 = vxpose.xlu0.b32.cont [3/16] %v219, 128
        %413 = vxpose.xlu0.b32.cont [4/16] %v235, 128
        %414 = vxpose.xlu0.b32.cont [5/16] %v251, 128
        %415 = vxpose.xlu0.b32.cont [6/16] %v267, 128
        %416 = vxpose.xlu0.b32.cont [7/16] %v283, 128
        %417 = vxpose.xlu0.b32.cont [8/16] %v299, 128
        %418 = vxpose.xlu0.b32.cont [9/16] %v315, 128
        %419 = vxpose.xlu0.b32.cont [10/16] %v331, 128
        %420 = vxpose.xlu0.b32.cont [11/16] %v347, 128
        %421 = vxpose.xlu0.b32.cont [12/16] %v363, 128
        %422 = vxpose.xlu0.b32.cont [13/16] 0.0, 128
        %423 = vxpose.xlu0.b32.cont [14/16] 0.0, 128
        %424 = vxpose.xlu0.b32.cont [15/16] 0.0, 128
        %425 = vxpose.xlu0.b32.end [16/16] 0.0, 128
        %v426 = vpop.trf.xlu0
        %v427 = vpop.trf.xlu0
        %v428 = vpop.trf.xlu0
        %v429 = vpop.trf.xlu0
        %v430 = vpop.trf.xlu0
        %v431 = vpop.trf.xlu0
        %v432 = vpop.trf.xlu0
        %v433 = vpop.trf.xlu0
        %v434 = vpop.trf.xlu0
        %v435 = vpop.trf.xlu0
        %v436 = vpop.trf.xlu0
        %v437 = vpop.trf.xlu0
        %v438 = vpop.trf.xlu0
        %v439 = vpop.trf.xlu0
        %v440 = vpop.trf.xlu0
        %v441 = vpop.trf.xlu0
        %442 = vxpose.xlu0.b32.start [1/16] %v188, 128
        %443 = vxpose.xlu0.b32.cont [2/16] %v204, 128
        %444 = vxpose.xlu0.b32.cont [3/16] %v220, 128
        %445 = vxpose.xlu0.b32.cont [4/16] %v236, 128
        %446 = vxpose.xlu0.b32.cont [5/16] %v252, 128
        %447 = vxpose.xlu0.b32.cont [6/16] %v268, 128
        %448 = vxpose.xlu0.b32.cont [7/16] %v284, 128
        %449 = vxpose.xlu0.b32.cont [8/16] %v300, 128
        %450 = vxpose.xlu0.b32.cont [9/16] %v316, 128
        %451 = vxpose.xlu0.b32.cont [10/16] %v332, 128
        %452 = vxpose.xlu0.b32.cont [11/16] %v348, 128
        %453 = vxpose.xlu0.b32.cont [12/16] %v364, 128
        %454 = vxpose.xlu0.b32.cont [13/16] 0.0, 128
        %455 = vxpose.xlu0.b32.cont [14/16] 0.0, 128
        %456 = vxpose.xlu0.b32.cont [15/16] 0.0, 128
        %457 = vxpose.xlu0.b32.end [16/16] 0.0, 128
        %v458 = vpop.trf.xlu0
        %v459 = vpop.trf.xlu0
        %v460 = vpop.trf.xlu0
        %v461 = vpop.trf.xlu0
        %v462 = vpop.trf.xlu0
        %v463 = vpop.trf.xlu0
        %v464 = vpop.trf.xlu0
        %v465 = vpop.trf.xlu0
        %v466 = vpop.trf.xlu0
        %v467 = vpop.trf.xlu0
        %v468 = vpop.trf.xlu0
        %v469 = vpop.trf.xlu0
        %v470 = vpop.trf.xlu0
        %v471 = vpop.trf.xlu0
        %v472 = vpop.trf.xlu0
        %v473 = vpop.trf.xlu0
        %474 = vxpose.xlu0.b32.start [1/16] %v189, 128
        %475 = vxpose.xlu0.b32.cont [2/16] %v205, 128
        %476 = vxpose.xlu0.b32.cont [3/16] %v221, 128
        %477 = vxpose.xlu0.b32.cont [4/16] %v237, 128
        %478 = vxpose.xlu0.b32.cont [5/16] %v253, 128
        %479 = vxpose.xlu0.b32.cont [6/16] %v269, 128
        %480 = vxpose.xlu0.b32.cont [7/16] %v285, 128
        %481 = vxpose.xlu0.b32.cont [8/16] %v301, 128
        %482 = vxpose.xlu0.b32.cont [9/16] %v317, 128
        %483 = vxpose.xlu0.b32.cont [10/16] %v333, 128
        %484 = vxpose.xlu0.b32.cont [11/16] %v349, 128
        %485 = vxpose.xlu0.b32.cont [12/16] %v365, 128
        %486 = vxpose.xlu0.b32.cont [13/16] 0.0, 128
        %487 = vxpose.xlu0.b32.cont [14/16] 0.0, 128
        %488 = vxpose.xlu0.b32.cont [15/16] 0.0, 128
        %489 = vxpose.xlu0.b32.end [16/16] 0.0, 128
        %v490 = vpop.trf.xlu0
        %v491 = vpop.trf.xlu0
        %v492 = vpop.trf.xlu0
        %v493 = vpop.trf.xlu0
        %v494 = vpop.trf.xlu0
        %v495 = vpop.trf.xlu0
        %v496 = vpop.trf.xlu0
        %v497 = vpop.trf.xlu0
        %v498 = vpop.trf.xlu0
        %v499 = vpop.trf.xlu0
        %v500 = vpop.trf.xlu0
        %v501 = vpop.trf.xlu0
        %v502 = vpop.trf.xlu0
        %v503 = vpop.trf.xlu0
        %v504 = vpop.trf.xlu0
        %v505 = vpop.trf.xlu0
        %506 = vxpose.xlu0.b32.start [1/16] %v190, 128
        %507 = vxpose.xlu0.b32.cont [2/16] %v206, 128
        %508 = vxpose.xlu0.b32.cont [3/16] %v222, 128
        %509 = vxpose.xlu0.b32.cont [4/16] %v238, 128
        %510 = vxpose.xlu0.b32.cont [5/16] %v254, 128
        %511 = vxpose.xlu0.b32.cont [6/16] %v270, 128
        %512 = vxpose.xlu0.b32.cont [7/16] %v286, 128
        %513 = vxpose.xlu0.b32.cont [8/16] %v302, 128
        %514 = vxpose.xlu0.b32.cont [9/16] %v318, 128
        %515 = vxpose.xlu0.b32.cont [10/16] %v334, 128
        %516 = vxpose.xlu0.b32.cont [11/16] %v350, 128
        %517 = vxpose.xlu0.b32.cont [12/16] %v366, 128
        %518 = vxpose.xlu0.b32.cont [13/16] 0.0, 128
        %519 = vxpose.xlu0.b32.cont [14/16] 0.0, 128
        %520 = vxpose.xlu0.b32.cont [15/16] 0.0, 128
        %521 = vxpose.xlu0.b32.end [16/16] 0.0, 128
        %v522 = vpop.trf.xlu0
        %v523 = vpop.trf.xlu0
        %v524 = vpop.trf.xlu0
        %v525 = vpop.trf.xlu0
        %v526 = vpop.trf.xlu0
        %v527 = vpop.trf.xlu0
        %v528 = vpop.trf.xlu0
        %v529 = vpop.trf.xlu0
        %v530 = vpop.trf.xlu0
        %v531 = vpop.trf.xlu0
        %v532 = vpop.trf.xlu0
        %v533 = vpop.trf.xlu0
        %v534 = vpop.trf.xlu0
        %v535 = vpop.trf.xlu0
        %v536 = vpop.trf.xlu0
        %v537 = vpop.trf.xlu0
        %538 = vxpose.xlu0.b32.start [1/16] %v191, 128
        %539 = vxpose.xlu0.b32.cont [2/16] %v207, 128
        %540 = vxpose.xlu0.b32.cont [3/16] %v223, 128
        %541 = vxpose.xlu0.b32.cont [4/16] %v239, 128
        %542 = vxpose.xlu0.b32.cont [5/16] %v255, 128
        %543 = vxpose.xlu0.b32.cont [6/16] %v271, 128
        %544 = vxpose.xlu0.b32.cont [7/16] %v287, 128
        %545 = vxpose.xlu0.b32.cont [8/16] %v303, 128
        %546 = vxpose.xlu0.b32.cont [9/16] %v319, 128
        %547 = vxpose.xlu0.b32.cont [10/16] %v335, 128
        %548 = vxpose.xlu0.b32.cont [11/16] %v351, 128
        %549 = vxpose.xlu0.b32.cont [12/16] %v367, 128
        %550 = vxpose.xlu0.b32.cont [13/16] 0.0, 128
        %551 = vxpose.xlu0.b32.cont [14/16] 0.0, 128
        %552 = vxpose.xlu0.b32.cont [15/16] 0.0, 128
        %553 = vxpose.xlu0.b32.end [16/16] 0.0, 128
        %v554 = vpop.trf.xlu0
        %v555 = vpop.trf.xlu0
        %v556 = vpop.trf.xlu0
        %v557 = vpop.trf.xlu0
        %v558 = vpop.trf.xlu0
        %v559 = vpop.trf.xlu0
        %v560 = vpop.trf.xlu0
        %v561 = vpop.trf.xlu0
        %v562 = vpop.trf.xlu0
        %v563 = vpop.trf.xlu0
        %v564 = vpop.trf.xlu0
        %v565 = vpop.trf.xlu0
        %v566 = vpop.trf.xlu0
        %v567 = vpop.trf.xlu0
        %v568 = vpop.trf.xlu0
        %v569 = vpop.trf.xlu0
        %570 = vxpose.xlu0.b32.start [1/16] %v192, 128
        %571 = vxpose.xlu0.b32.cont [2/16] %v208, 128
        %572 = vxpose.xlu0.b32.cont [3/16] %v224, 128
        %573 = vxpose.xlu0.b32.cont [4/16] %v240, 128
        %574 = vxpose.xlu0.b32.cont [5/16] %v256, 128
        %575 = vxpose.xlu0.b32.cont [6/16] %v272, 128
        %576 = vxpose.xlu0.b32.cont [7/16] %v288, 128
        %577 = vxpose.xlu0.b32.cont [8/16] %v304, 128
        %578 = vxpose.xlu0.b32.cont [9/16] %v320, 128
        %579 = vxpose.xlu0.b32.cont [10/16] %v336, 128
        %580 = vxpose.xlu0.b32.cont [11/16] %v352, 128
        %581 = vxpose.xlu0.b32.cont [12/16] %v368, 128
        %582 = vxpose.xlu0.b32.cont [13/16] 0.0, 128
        %583 = vxpose.xlu0.b32.cont [14/16] 0.0, 128
        %584 = vxpose.xlu0.b32.cont [15/16] 0.0, 128
        %585 = vxpose.xlu0.b32.end [16/16] 0.0, 128
        %v586 = vpop.trf.xlu0
        %v587 = vpop.trf.xlu0
        %v588 = vpop.trf.xlu0
        %v589 = vpop.trf.xlu0
        %v590 = vpop.trf.xlu0
        %v591 = vpop.trf.xlu0
        %v592 = vpop.trf.xlu0
        %v593 = vpop.trf.xlu0
        %v594 = vpop.trf.xlu0
        %v595 = vpop.trf.xlu0
        %v596 = vpop.trf.xlu0
        %v597 = vpop.trf.xlu0
        %v598 = vpop.trf.xlu0
        %v599 = vpop.trf.xlu0
        %v600 = vpop.trf.xlu0
        %v601 = vpop.trf.xlu0
        %602 = vxpose.xlu0.b32.start [1/16] %v193, 128
        %603 = vxpose.xlu0.b32.cont [2/16] %v209, 128
        %604 = vxpose.xlu0.b32.cont [3/16] %v225, 128
        %605 = vxpose.xlu0.b32.cont [4/16] %v241, 128
        %606 = vxpose.xlu0.b32.cont [5/16] %v257, 128
        %607 = vxpose.xlu0.b32.cont [6/16] %v273, 128
        %608 = vxpose.xlu0.b32.cont [7/16] %v289, 128
        %609 = vxpose.xlu0.b32.cont [8/16] %v305, 128
        %610 = vxpose.xlu0.b32.cont [9/16] %v321, 128
        %611 = vxpose.xlu0.b32.cont [10/16] %v337, 128
        %612 = vxpose.xlu0.b32.cont [11/16] %v353, 128
        %613 = vxpose.xlu0.b32.cont [12/16] %v369, 128
        %614 = vxpose.xlu0.b32.cont [13/16] 0.0, 128
        %615 = vxpose.xlu0.b32.cont [14/16] 0.0, 128
        %616 = vxpose.xlu0.b32.cont [15/16] 0.0, 128
        %617 = vxpose.xlu0.b32.end [16/16] 0.0, 128
        %v618 = vpop.trf.xlu0
        %v619 = vpop.trf.xlu0
        %v620 = vpop.trf.xlu0
        %v621 = vpop.trf.xlu0
        %v622 = vpop.trf.xlu0
        %v623 = vpop.trf.xlu0
        %v624 = vpop.trf.xlu0
        %v625 = vpop.trf.xlu0
        %v626 = vpop.trf.xlu0
        %v627 = vpop.trf.xlu0
        %v628 = vpop.trf.xlu0
        %v629 = vpop.trf.xlu0
        %v630 = vpop.trf.xlu0
        %v631 = vpop.trf.xlu0
        %v632 = vpop.trf.xlu0
        %v633 = vpop.trf.xlu0
        %634 = vxpose.xlu0.b32.start [1/16] %v194, 128
        %635 = vxpose.xlu0.b32.cont [2/16] %v210, 128
        %636 = vxpose.xlu0.b32.cont [3/16] %v226, 128
        %637 = vxpose.xlu0.b32.cont [4/16] %v242, 128
        %638 = vxpose.xlu0.b32.cont [5/16] %v258, 128
        %639 = vxpose.xlu0.b32.cont [6/16] %v274, 128
        %640 = vxpose.xlu0.b32.cont [7/16] %v290, 128
        %641 = vxpose.xlu0.b32.cont [8/16] %v306, 128
        %642 = vxpose.xlu0.b32.cont [9/16] %v322, 128
        %643 = vxpose.xlu0.b32.cont [10/16] %v338, 128
        %644 = vxpose.xlu0.b32.cont [11/16] %v354, 128
        %645 = vxpose.xlu0.b32.cont [12/16] %v370, 128
        %646 = vxpose.xlu0.b32.cont [13/16] 0.0, 128
        %647 = vxpose.xlu0.b32.cont [14/16] 0.0, 128
        %648 = vxpose.xlu0.b32.cont [15/16] 0.0, 128
        %649 = vxpose.xlu0.b32.end [16/16] 0.0, 128
        %v650 = vpop.trf.xlu0
        %v651 = vpop.trf.xlu0
        %v652 = vpop.trf.xlu0
        %v653 = vpop.trf.xlu0
        %v654 = vpop.trf.xlu0
        %v655 = vpop.trf.xlu0
        %v656 = vpop.trf.xlu0
        %v657 = vpop.trf.xlu0
        %v658 = vpop.trf.xlu0
        %v659 = vpop.trf.xlu0
        %v660 = vpop.trf.xlu0
        %v661 = vpop.trf.xlu0
        %v662 = vpop.trf.xlu0
        %v663 = vpop.trf.xlu0
        %v664 = vpop.trf.xlu0
        %v665 = vpop.trf.xlu0
        %666 = vxpose.xlu0.b32.start [1/16] %v195, 128
        %667 = vxpose.xlu0.b32.cont [2/16] %v211, 128
        %668 = vxpose.xlu0.b32.cont [3/16] %v227, 128
        %669 = vxpose.xlu0.b32.cont [4/16] %v243, 128
        %670 = vxpose.xlu0.b32.cont [5/16] %v259, 128
        %671 = vxpose.xlu0.b32.cont [6/16] %v275, 128
        %672 = vxpose.xlu0.b32.cont [7/16] %v291, 128
        %673 = vxpose.xlu0.b32.cont [8/16] %v307, 128
        %674 = vxpose.xlu0.b32.cont [9/16] %v323, 128
        %675 = vxpose.xlu0.b32.cont [10/16] %v339, 128
        %676 = vxpose.xlu0.b32.cont [11/16] %v355, 128
        %677 = vxpose.xlu0.b32.cont [12/16] %v371, 128
        %678 = vxpose.xlu0.b32.cont [13/16] 0.0, 128
        %679 = vxpose.xlu0.b32.cont [14/16] 0.0, 128
        %680 = vxpose.xlu0.b32.cont [15/16] 0.0, 128
        %681 = vxpose.xlu0.b32.end [16/16] 0.0, 128
        %v682 = vpop.trf.xlu0
        %v683 = vpop.trf.xlu0
        %v684 = vpop.trf.xlu0
        %v685 = vpop.trf.xlu0
        %v686 = vpop.trf.xlu0
        %v687 = vpop.trf.xlu0
        %v688 = vpop.trf.xlu0
        %v689 = vpop.trf.xlu0
        %v690 = vpop.trf.xlu0
        %v691 = vpop.trf.xlu0
        %v692 = vpop.trf.xlu0
        %v693 = vpop.trf.xlu0
        %v694 = vpop.trf.xlu0
        %v695 = vpop.trf.xlu0
        %v696 = vpop.trf.xlu0
        %v697 = vpop.trf.xlu0
        %698 = vxpose.xlu0.b32.start [1/16] %v196, 128
        %699 = vxpose.xlu0.b32.cont [2/16] %v212, 128
        %700 = vxpose.xlu0.b32.cont [3/16] %v228, 128
        %701 = vxpose.xlu0.b32.cont [4/16] %v244, 128
        %702 = vxpose.xlu0.b32.cont [5/16] %v260, 128
        %703 = vxpose.xlu0.b32.cont [6/16] %v276, 128
        %704 = vxpose.xlu0.b32.cont [7/16] %v292, 128
        %705 = vxpose.xlu0.b32.cont [8/16] %v308, 128
        %706 = vxpose.xlu0.b32.cont [9/16] %v324, 128
        %707 = vxpose.xlu0.b32.cont [10/16] %v340, 128
        %708 = vxpose.xlu0.b32.cont [11/16] %v356, 128
        %709 = vxpose.xlu0.b32.cont [12/16] %v372, 128
        %710 = vxpose.xlu0.b32.cont [13/16] 0.0, 128
        %711 = vxpose.xlu0.b32.cont [14/16] 0.0, 128
        %712 = vxpose.xlu0.b32.cont [15/16] 0.0, 128
        %713 = vxpose.xlu0.b32.end [16/16] 0.0, 128
        %v714 = vpop.trf.xlu0
        %v715 = vpop.trf.xlu0
        %v716 = vpop.trf.xlu0
        %v717 = vpop.trf.xlu0
        %v718 = vpop.trf.xlu0
        %v719 = vpop.trf.xlu0
        %v720 = vpop.trf.xlu0
        %v721 = vpop.trf.xlu0
        %v722 = vpop.trf.xlu0
        %v723 = vpop.trf.xlu0
        %v724 = vpop.trf.xlu0
        %v725 = vpop.trf.xlu0
        %v726 = vpop.trf.xlu0
        %v727 = vpop.trf.xlu0
        %v728 = vpop.trf.xlu0
        %v729 = vpop.trf.xlu0
        %730 = vxpose.xlu0.b32.start [1/16] %v197, 128
        %731 = vxpose.xlu0.b32.cont [2/16] %v213, 128
        %732 = vxpose.xlu0.b32.cont [3/16] %v229, 128
        %733 = vxpose.xlu0.b32.cont [4/16] %v245, 128
        %734 = vxpose.xlu0.b32.cont [5/16] %v261, 128
        %735 = vxpose.xlu0.b32.cont [6/16] %v277, 128
        %736 = vxpose.xlu0.b32.cont [7/16] %v293, 128
        %737 = vxpose.xlu0.b32.cont [8/16] %v309, 128
        %738 = vxpose.xlu0.b32.cont [9/16] %v325, 128
        %739 = vxpose.xlu0.b32.cont [10/16] %v341, 128
        %740 = vxpose.xlu0.b32.cont [11/16] %v357, 128
        %741 = vxpose.xlu0.b32.cont [12/16] %v373, 128
        %742 = vxpose.xlu0.b32.cont [13/16] 0.0, 128
        %743 = vxpose.xlu0.b32.cont [14/16] 0.0, 128
        %744 = vxpose.xlu0.b32.cont [15/16] 0.0, 128
        %745 = vxpose.xlu0.b32.end [16/16] 0.0, 128
        %v746 = vpop.trf.xlu0
        %v747 = vpop.trf.xlu0
        %v748 = vpop.trf.xlu0
        %v749 = vpop.trf.xlu0
        %v750 = vpop.trf.xlu0
        %v751 = vpop.trf.xlu0
        %v752 = vpop.trf.xlu0
        %v753 = vpop.trf.xlu0
        %v754 = vpop.trf.xlu0
        %v755 = vpop.trf.xlu0
        %v756 = vpop.trf.xlu0
        %v757 = vpop.trf.xlu0
        %v758 = vpop.trf.xlu0
        %v759 = vpop.trf.xlu0
        %v760 = vpop.trf.xlu0
        %v761 = vpop.trf.xlu0
        %762 = vxpose.xlu0.b32.start [1/16] %v198, 128
        %763 = vxpose.xlu0.b32.cont [2/16] %v214, 128
        %764 = vxpose.xlu0.b32.cont [3/16] %v230, 128
        %765 = vxpose.xlu0.b32.cont [4/16] %v246, 128
        %766 = vxpose.xlu0.b32.cont [5/16] %v262, 128
        %767 = vxpose.xlu0.b32.cont [6/16] %v278, 128
        %768 = vxpose.xlu0.b32.cont [7/16] %v294, 128
        %769 = vxpose.xlu0.b32.cont [8/16] %v310, 128
        %770 = vxpose.xlu0.b32.cont [9/16] %v326, 128
        %771 = vxpose.xlu0.b32.cont [10/16] %v342, 128
        %772 = vxpose.xlu0.b32.cont [11/16] %v358, 128
        %773 = vxpose.xlu0.b32.cont [12/16] %v374, 128
        %774 = vxpose.xlu0.b32.cont [13/16] 0.0, 128
        %775 = vxpose.xlu0.b32.cont [14/16] 0.0, 128
        %776 = vxpose.xlu0.b32.cont [15/16] 0.0, 128
        %777 = vxpose.xlu0.b32.end [16/16] 0.0, 128
        %v778 = vpop.trf.xlu0
        %v779 = vpop.trf.xlu0
        %v780 = vpop.trf.xlu0
        %v781 = vpop.trf.xlu0
        %v782 = vpop.trf.xlu0
        %v783 = vpop.trf.xlu0
        %v784 = vpop.trf.xlu0
        %v785 = vpop.trf.xlu0
        %v786 = vpop.trf.xlu0
        %v787 = vpop.trf.xlu0
        %v788 = vpop.trf.xlu0
        %v789 = vpop.trf.xlu0
        %v790 = vpop.trf.xlu0
        %v791 = vpop.trf.xlu0
        %v792 = vpop.trf.xlu0
        %v793 = vpop.trf.xlu0
        %794 = vxpose.xlu0.b32.start [1/16] %v199, 128
        %795 = vxpose.xlu0.b32.cont [2/16] %v215, 128
        %796 = vxpose.xlu0.b32.cont [3/16] %v231, 128
        %797 = vxpose.xlu0.b32.cont [4/16] %v247, 128
        %798 = vxpose.xlu0.b32.cont [5/16] %v263, 128
        %799 = vxpose.xlu0.b32.cont [6/16] %v279, 128
        %800 = vxpose.xlu0.b32.cont [7/16] %v295, 128
        %801 = vxpose.xlu0.b32.cont [8/16] %v311, 128
        %802 = vxpose.xlu0.b32.cont [9/16] %v327, 128
        %803 = vxpose.xlu0.b32.cont [10/16] %v343, 128
        %804 = vxpose.xlu0.b32.cont [11/16] %v359, 128
        %805 = vxpose.xlu0.b32.cont [12/16] %v375, 128
        %806 = vxpose.xlu0.b32.cont [13/16] 0.0, 128
        %807 = vxpose.xlu0.b32.cont [14/16] 0.0, 128
        %808 = vxpose.xlu0.b32.cont [15/16] 0.0, 128
        %809 = vxpose.xlu0.b32.end [16/16] 0.0, 128
        %v810 = vpop.trf.xlu0
        %v811 = vpop.trf.xlu0
        %v812 = vpop.trf.xlu0
        %v813 = vpop.trf.xlu0
        %v814 = vpop.trf.xlu0
        %v815 = vpop.trf.xlu0
        %v816 = vpop.trf.xlu0
        %v817 = vpop.trf.xlu0
        %v818 = vpop.trf.xlu0
        %v819 = vpop.trf.xlu0
        %v820 = vpop.trf.xlu0
        %v821 = vpop.trf.xlu0
        %v822 = vpop.trf.xlu0
        %v823 = vpop.trf.xlu0
        %v824 = vpop.trf.xlu0
        %v825 = vpop.trf.xlu0
        %826 = vxpose.xlu0.b32.start [1/16] %v200, 128
        %827 = vxpose.xlu0.b32.cont [2/16] %v216, 128
        %828 = vxpose.xlu0.b32.cont [3/16] %v232, 128
        %829 = vxpose.xlu0.b32.cont [4/16] %v248, 128
        %830 = vxpose.xlu0.b32.cont [5/16] %v264, 128
        %831 = vxpose.xlu0.b32.cont [6/16] %v280, 128
        %832 = vxpose.xlu0.b32.cont [7/16] %v296, 128
        %833 = vxpose.xlu0.b32.cont [8/16] %v312, 128
        %834 = vxpose.xlu0.b32.cont [9/16] %v328, 128
        %835 = vxpose.xlu0.b32.cont [10/16] %v344, 128
        %836 = vxpose.xlu0.b32.cont [11/16] %v360, 128
        %837 = vxpose.xlu0.b32.cont [12/16] %v376, 128
        %838 = vxpose.xlu0.b32.cont [13/16] 0.0, 128
        %839 = vxpose.xlu0.b32.cont [14/16] 0.0, 128
        %840 = vxpose.xlu0.b32.cont [15/16] 0.0, 128
        %841 = vxpose.xlu0.b32.end [16/16] 0.0, 128
        %v842 = vpop.trf.xlu0
        %v843 = vpop.trf.xlu0
        %v844 = vpop.trf.xlu0
        %v845 = vpop.trf.xlu0
        %v846 = vpop.trf.xlu0
        %v847 = vpop.trf.xlu0
        %v848 = vpop.trf.xlu0
        %v849 = vpop.trf.xlu0
        %v850 = vpop.trf.xlu0
        %v851 = vpop.trf.xlu0
        %v852 = vpop.trf.xlu0
        %v853 = vpop.trf.xlu0
        %v854 = vpop.trf.xlu0
        %v855 = vpop.trf.xlu0
        %v856 = vpop.trf.xlu0
        %v857 = vpop.trf.xlu0
        %858 = vxpose.xlu0.b32.start [1/16] %v201, 128
        %859 = vxpose.xlu0.b32.cont [2/16] %v217, 128
        %860 = vxpose.xlu0.b32.cont [3/16] %v233, 128
        %861 = vxpose.xlu0.b32.cont [4/16] %v249, 128
        %862 = vxpose.xlu0.b32.cont [5/16] %v265, 128
        %863 = vxpose.xlu0.b32.cont [6/16] %v281, 128
        %864 = vxpose.xlu0.b32.cont [7/16] %v297, 128
        %865 = vxpose.xlu0.b32.cont [8/16] %v313, 128
        %866 = vxpose.xlu0.b32.cont [9/16] %v329, 128
        %867 = vxpose.xlu0.b32.cont [10/16] %v345, 128
        %868 = vxpose.xlu0.b32.cont [11/16] %v361, 128
        %869 = vxpose.xlu0.b32.cont [12/16] %v377, 128
        %870 = vxpose.xlu0.b32.cont [13/16] 0.0, 128
        %871 = vxpose.xlu0.b32.cont [14/16] 0.0, 128
        %872 = vxpose.xlu0.b32.cont [15/16] 0.0, 128
        %873 = vxpose.xlu0.b32.end [16/16] 0.0, 128
        %v874 = vpop.trf.xlu0
        %v875 = vpop.trf.xlu0
        %v876 = vpop.trf.xlu0
        %v877 = vpop.trf.xlu0
        %v878 = vpop.trf.xlu0
        %v879 = vpop.trf.xlu0
        %v880 = vpop.trf.xlu0
        %v881 = vpop.trf.xlu0
        %v882 = vpop.trf.xlu0
        %v883 = vpop.trf.xlu0
        %v884 = vpop.trf.xlu0
        %v885 = vpop.trf.xlu0
        %v886 = vpop.trf.xlu0
        %v887 = vpop.trf.xlu0
        %v888 = vpop.trf.xlu0
        %v889 = vpop.trf.xlu0
        %vm890 = vcmask 785408
        %891 = vst.msk [vmem:[%s184] sm:$0xff] %vm890, %v394
        %892 = vst.msk [vmem:[%s184 + $0x8] sm:$0xff] %vm890, %v395
        %893 = vst.msk [vmem:[%s184 + $0x10] sm:$0xff] %vm890, %v396
        %894 = vst.msk [vmem:[%s184 + $0x18] sm:$0xff] %vm890, %v397
        %895 = vst.msk [vmem:[%s184 + $0x20] sm:$0xff] %vm890, %v398
        %896 = vst.msk [vmem:[%s184 + $0x28] sm:$0xff] %vm890, %v399
        %897 = vst.msk [vmem:[%s184 + $0x30] sm:$0xff] %vm890, %v400
        %898 = vst.msk [vmem:[%s184 + $0x38] sm:$0xff] %vm890, %v401
        %899 = vst.msk [vmem:[%s184 + $0x40] sm:$0xff] %vm890, %v402
        %900 = vst.msk [vmem:[%s184 + $0x48] sm:$0xff] %vm890, %v403
        %901 = vst.msk [vmem:[%s184 + $0x50] sm:$0xff] %vm890, %v404
        %902 = vst.msk [vmem:[%s184 + $0x58] sm:$0xff] %vm890, %v405
        %903 = vst.msk [vmem:[%s184 + $0x60] sm:$0xff] %vm890, %v406
        %904 = vst.msk [vmem:[%s184 + $0x68] sm:$0xff] %vm890, %v407
        %905 = vst.msk [vmem:[%s184 + $0x70] sm:$0xff] %vm890, %v408
        %906 = vst.msk [vmem:[%s184 + $0x78] sm:$0xff] %vm890, %v409
        %907 = vst.msk [vmem:[%s184 + $0x80] sm:$0xff] %vm890, %v426
        %908 = vst.msk [vmem:[%s184 + $0x88] sm:$0xff] %vm890, %v427
        %909 = vst.msk [vmem:[%s184 + $0x90] sm:$0xff] %vm890, %v428
        %910 = vst.msk [vmem:[%s184 + $0x98] sm:$0xff] %vm890, %v429
        %911 = vst.msk [vmem:[%s184 + $0xa0] sm:$0xff] %vm890, %v430
        %912 = vst.msk [vmem:[%s184 + $0xa8] sm:$0xff] %vm890, %v431
        %913 = vst.msk [vmem:[%s184 + $0xb0] sm:$0xff] %vm890, %v432
        %914 = vst.msk [vmem:[%s184 + $0xb8] sm:$0xff] %vm890, %v433
        %915 = vst.msk [vmem:[%s184 + $0xc0] sm:$0xff] %vm890, %v434
        %916 = vst.msk [vmem:[%s184 + $0xc8] sm:$0xff] %vm890, %v435
        %917 = vst.msk [vmem:[%s184 + $0xd0] sm:$0xff] %vm890, %v436
        %918 = vst.msk [vmem:[%s184 + $0xd8] sm:$0xff] %vm890, %v437
        %919 = vst.msk [vmem:[%s184 + $0xe0] sm:$0xff] %vm890, %v438
        %920 = vst.msk [vmem:[%s184 + $0xe8] sm:$0xff] %vm890, %v439
        %921 = vst.msk [vmem:[%s184 + $0xf0] sm:$0xff] %vm890, %v440
        %922 = vst.msk [vmem:[%s184 + $0xf8] sm:$0xff] %vm890, %v441
        %923 = vst.msk [vmem:[%s184 + $0x100] sm:$0xff] %vm890, %v458
        %924 = vst.msk [vmem:[%s184 + $0x108] sm:$0xff] %vm890, %v459
        %925 = vst.msk [vmem:[%s184 + $0x110] sm:$0xff] %vm890, %v460
        %926 = vst.msk [vmem:[%s184 + $0x118] sm:$0xff] %vm890, %v461
        %927 = vst.msk [vmem:[%s184 + $0x120] sm:$0xff] %vm890, %v462
        %928 = vst.msk [vmem:[%s184 + $0x128] sm:$0xff] %vm890, %v463
        %929 = vst.msk [vmem:[%s184 + $0x130] sm:$0xff] %vm890, %v464
        %930 = vst.msk [vmem:[%s184 + $0x138] sm:$0xff] %vm890, %v465
        %931 = vst.msk [vmem:[%s184 + $0x140] sm:$0xff] %vm890, %v466
        %932 = vst.msk [vmem:[%s184 + $0x148] sm:$0xff] %vm890, %v467
        %933 = vst.msk [vmem:[%s184 + $0x150] sm:$0xff] %vm890, %v468
        %934 = vst.msk [vmem:[%s184 + $0x158] sm:$0xff] %vm890, %v469
        %935 = vst.msk [vmem:[%s184 + $0x160] sm:$0xff] %vm890, %v470
        %936 = vst.msk [vmem:[%s184 + $0x168] sm:$0xff] %vm890, %v471
        %937 = vst.msk [vmem:[%s184 + $0x170] sm:$0xff] %vm890, %v472
        %938 = vst.msk [vmem:[%s184 + $0x178] sm:$0xff] %vm890, %v473
        %939 = vst.msk [vmem:[%s184 + $0x180] sm:$0xff] %vm890, %v490
        %940 = vst.msk [vmem:[%s184 + $0x188] sm:$0xff] %vm890, %v491
        %941 = vst.msk [vmem:[%s184 + $0x190] sm:$0xff] %vm890, %v492
        %942 = vst.msk [vmem:[%s184 + $0x198] sm:$0xff] %vm890, %v493
        %943 = vst.msk [vmem:[%s184 + $0x1a0] sm:$0xff] %vm890, %v494
        %944 = vst.msk [vmem:[%s184 + $0x1a8] sm:$0xff] %vm890, %v495
        %945 = vst.msk [vmem:[%s184 + $0x1b0] sm:$0xff] %vm890, %v496
        %946 = vst.msk [vmem:[%s184 + $0x1b8] sm:$0xff] %vm890, %v497
        %947 = vst.msk [vmem:[%s184 + $0x1c0] sm:$0xff] %vm890, %v498
        %948 = vst.msk [vmem:[%s184 + $0x1c8] sm:$0xff] %vm890, %v499
        %949 = vst.msk [vmem:[%s184 + $0x1d0] sm:$0xff] %vm890, %v500
        %950 = vst.msk [vmem:[%s184 + $0x1d8] sm:$0xff] %vm890, %v501
        %951 = vst.msk [vmem:[%s184 + $0x1e0] sm:$0xff] %vm890, %v502
        %952 = vst.msk [vmem:[%s184 + $0x1e8] sm:$0xff] %vm890, %v503
        %953 = vst.msk [vmem:[%s184 + $0x1f0] sm:$0xff] %vm890, %v504
        %954 = vst.msk [vmem:[%s184 + $0x1f8] sm:$0xff] %vm890, %v505
        %955 = vst.msk [vmem:[%s184 + $0x200] sm:$0xff] %vm890, %v522
        %956 = vst.msk [vmem:[%s184 + $0x208] sm:$0xff] %vm890, %v523
        %957 = vst.msk [vmem:[%s184 + $0x210] sm:$0xff] %vm890, %v524
        %958 = vst.msk [vmem:[%s184 + $0x218] sm:$0xff] %vm890, %v525
        %959 = vst.msk [vmem:[%s184 + $0x220] sm:$0xff] %vm890, %v526
        %960 = vst.msk [vmem:[%s184 + $0x228] sm:$0xff] %vm890, %v527
        %961 = vst.msk [vmem:[%s184 + $0x230] sm:$0xff] %vm890, %v528
        %962 = vst.msk [vmem:[%s184 + $0x238] sm:$0xff] %vm890, %v529
        %963 = vst.msk [vmem:[%s184 + $0x240] sm:$0xff] %vm890, %v530
        %964 = vst.msk [vmem:[%s184 + $0x248] sm:$0xff] %vm890, %v531
        %965 = vst.msk [vmem:[%s184 + $0x250] sm:$0xff] %vm890, %v532
        %966 = vst.msk [vmem:[%s184 + $0x258] sm:$0xff] %vm890, %v533
        %967 = vst.msk [vmem:[%s184 + $0x260] sm:$0xff] %vm890, %v534
        %968 = vst.msk [vmem:[%s184 + $0x268] sm:$0xff] %vm890, %v535
        %969 = vst.msk [vmem:[%s184 + $0x270] sm:$0xff] %vm890, %v536
        %970 = vst.msk [vmem:[%s184 + $0x278] sm:$0xff] %vm890, %v537
        %971 = vst.msk [vmem:[%s184 + $0x280] sm:$0xff] %vm890, %v554
        %972 = vst.msk [vmem:[%s184 + $0x288] sm:$0xff] %vm890, %v555
        %973 = vst.msk [vmem:[%s184 + $0x290] sm:$0xff] %vm890, %v556
        %974 = vst.msk [vmem:[%s184 + $0x298] sm:$0xff] %vm890, %v557
        %975 = vst.msk [vmem:[%s184 + $0x2a0] sm:$0xff] %vm890, %v558
        %976 = vst.msk [vmem:[%s184 + $0x2a8] sm:$0xff] %vm890, %v559
        %977 = vst.msk [vmem:[%s184 + $0x2b0] sm:$0xff] %vm890, %v560
        %978 = vst.msk [vmem:[%s184 + $0x2b8] sm:$0xff] %vm890, %v561
        %979 = vst.msk [vmem:[%s184 + $0x2c0] sm:$0xff] %vm890, %v562
        %980 = vst.msk [vmem:[%s184 + $0x2c8] sm:$0xff] %vm890, %v563
        %981 = vst.msk [vmem:[%s184 + $0x2d0] sm:$0xff] %vm890, %v564
        %982 = vst.msk [vmem:[%s184 + $0x2d8] sm:$0xff] %vm890, %v565
        %983 = vst.msk [vmem:[%s184 + $0x2e0] sm:$0xff] %vm890, %v566
        %984 = vst.msk [vmem:[%s184 + $0x2e8] sm:$0xff] %vm890, %v567
        %985 = vst.msk [vmem:[%s184 + $0x2f0] sm:$0xff] %vm890, %v568
        %986 = vst.msk [vmem:[%s184 + $0x2f8] sm:$0xff] %vm890, %v569
        %987 = vst.msk [vmem:[%s184 + $0x300] sm:$0xff] %vm890, %v586
        %988 = vst.msk [vmem:[%s184 + $0x308] sm:$0xff] %vm890, %v587
        %989 = vst.msk [vmem:[%s184 + $0x310] sm:$0xff] %vm890, %v588
        %990 = vst.msk [vmem:[%s184 + $0x318] sm:$0xff] %vm890, %v589
        %991 = vst.msk [vmem:[%s184 + $0x320] sm:$0xff] %vm890, %v590
        %992 = vst.msk [vmem:[%s184 + $0x328] sm:$0xff] %vm890, %v591
        %993 = vst.msk [vmem:[%s184 + $0x330] sm:$0xff] %vm890, %v592
        %994 = vst.msk [vmem:[%s184 + $0x338] sm:$0xff] %vm890, %v593
        %995 = vst.msk [vmem:[%s184 + $0x340] sm:$0xff] %vm890, %v594
        %996 = vst.msk [vmem:[%s184 + $0x348] sm:$0xff] %vm890, %v595
        %997 = vst.msk [vmem:[%s184 + $0x350] sm:$0xff] %vm890, %v596
        %998 = vst.msk [vmem:[%s184 + $0x358] sm:$0xff] %vm890, %v597
        %999 = vst.msk [vmem:[%s184 + $0x360] sm:$0xff] %vm890, %v598
        %1000 = vst.msk [vmem:[%s184 + $0x368] sm:$0xff] %vm890, %v599
        %1001 = vst.msk [vmem:[%s184 + $0x370] sm:$0xff] %vm890, %v600
        %1002 = vst.msk [vmem:[%s184 + $0x378] sm:$0xff] %vm890, %v601
        %1003 = vst.msk [vmem:[%s184 + $0x380] sm:$0xff] %vm890, %v618
        %1004 = vst.msk [vmem:[%s184 + $0x388] sm:$0xff] %vm890, %v619
        %1005 = vst.msk [vmem:[%s184 + $0x390] sm:$0xff] %vm890, %v620
        %1006 = vst.msk [vmem:[%s184 + $0x398] sm:$0xff] %vm890, %v621
        %1007 = vst.msk [vmem:[%s184 + $0x3a0] sm:$0xff] %vm890, %v622
        %1008 = vst.msk [vmem:[%s184 + $0x3a8] sm:$0xff] %vm890, %v623
        %1009 = vst.msk [vmem:[%s184 + $0x3b0] sm:$0xff] %vm890, %v624
        %1010 = vst.msk [vmem:[%s184 + $0x3b8] sm:$0xff] %vm890, %v625
        %1011 = vst.msk [vmem:[%s184 + $0x3c0] sm:$0xff] %vm890, %v626
        %1012 = vst.msk [vmem:[%s184 + $0x3c8] sm:$0xff] %vm890, %v627
        %1013 = vst.msk [vmem:[%s184 + $0x3d0] sm:$0xff] %vm890, %v628
        %1014 = vst.msk [vmem:[%s184 + $0x3d8] sm:$0xff] %vm890, %v629
        %1015 = vst.msk [vmem:[%s184 + $0x3e0] sm:$0xff] %vm890, %v630
        %1016 = vst.msk [vmem:[%s184 + $0x3e8] sm:$0xff] %vm890, %v631
        %1017 = vst.msk [vmem:[%s184 + $0x3f0] sm:$0xff] %vm890, %v632
        %1018 = vst.msk [vmem:[%s184 + $0x3f8] sm:$0xff] %vm890, %v633
        %1019 = vst.msk [vmem:[%s184 + $0x400] sm:$0xff] %vm890, %v650
        %1020 = vst.msk [vmem:[%s184 + $0x408] sm:$0xff] %vm890, %v651
        %1021 = vst.msk [vmem:[%s184 + $0x410] sm:$0xff] %vm890, %v652
        %1022 = vst.msk [vmem:[%s184 + $0x418] sm:$0xff] %vm890, %v653
        %1023 = vst.msk [vmem:[%s184 + $0x420] sm:$0xff] %vm890, %v654
        %1024 = vst.msk [vmem:[%s184 + $0x428] sm:$0xff] %vm890, %v655
        %1025 = vst.msk [vmem:[%s184 + $0x430] sm:$0xff] %vm890, %v656
        %1026 = vst.msk [vmem:[%s184 + $0x438] sm:$0xff] %vm890, %v657
        %1027 = vst.msk [vmem:[%s184 + $0x440] sm:$0xff] %vm890, %v658
        %1028 = vst.msk [vmem:[%s184 + $0x448] sm:$0xff] %vm890, %v659
        %1029 = vst.msk [vmem:[%s184 + $0x450] sm:$0xff] %vm890, %v660
        %1030 = vst.msk [vmem:[%s184 + $0x458] sm:$0xff] %vm890, %v661
        %1031 = vst.msk [vmem:[%s184 + $0x460] sm:$0xff] %vm890, %v662
        %1032 = vst.msk [vmem:[%s184 + $0x468] sm:$0xff] %vm890, %v663
        %1033 = vst.msk [vmem:[%s184 + $0x470] sm:$0xff] %vm890, %v664
        %1034 = vst.msk [vmem:[%s184 + $0x478] sm:$0xff] %vm890, %v665
        %1035 = vst.msk [vmem:[%s184 + $0x480] sm:$0xff] %vm890, %v682
        %1036 = vst.msk [vmem:[%s184 + $0x488] sm:$0xff] %vm890, %v683
        %1037 = vst.msk [vmem:[%s184 + $0x490] sm:$0xff] %vm890, %v684
        %1038 = vst.msk [vmem:[%s184 + $0x498] sm:$0xff] %vm890, %v685
        %1039 = vst.msk [vmem:[%s184 + $0x4a0] sm:$0xff] %vm890, %v686
        %1040 = vst.msk [vmem:[%s184 + $0x4a8] sm:$0xff] %vm890, %v687
        %1041 = vst.msk [vmem:[%s184 + $0x4b0] sm:$0xff] %vm890, %v688
        %1042 = vst.msk [vmem:[%s184 + $0x4b8] sm:$0xff] %vm890, %v689
        %1043 = vst.msk [vmem:[%s184 + $0x4c0] sm:$0xff] %vm890, %v690
        %1044 = vst.msk [vmem:[%s184 + $0x4c8] sm:$0xff] %vm890, %v691
        %1045 = vst.msk [vmem:[%s184 + $0x4d0] sm:$0xff] %vm890, %v692
        %1046 = vst.msk [vmem:[%s184 + $0x4d8] sm:$0xff] %vm890, %v693
        %1047 = vst.msk [vmem:[%s184 + $0x4e0] sm:$0xff] %vm890, %v694
        %1048 = vst.msk [vmem:[%s184 + $0x4e8] sm:$0xff] %vm890, %v695
        %1049 = vst.msk [vmem:[%s184 + $0x4f0] sm:$0xff] %vm890, %v696
        %1050 = vst.msk [vmem:[%s184 + $0x4f8] sm:$0xff] %vm890, %v697
        %1051 = vst.msk [vmem:[%s184 + $0x500] sm:$0xff] %vm890, %v714
        %1052 = vst.msk [vmem:[%s184 + $0x508] sm:$0xff] %vm890, %v715
        %1053 = vst.msk [vmem:[%s184 + $0x510] sm:$0xff] %vm890, %v716
        %1054 = vst.msk [vmem:[%s184 + $0x518] sm:$0xff] %vm890, %v717
        %1055 = vst.msk [vmem:[%s184 + $0x520] sm:$0xff] %vm890, %v718
        %1056 = vst.msk [vmem:[%s184 + $0x528] sm:$0xff] %vm890, %v719
        %1057 = vst.msk [vmem:[%s184 + $0x530] sm:$0xff] %vm890, %v720
        %1058 = vst.msk [vmem:[%s184 + $0x538] sm:$0xff] %vm890, %v721
        %1059 = vst.msk [vmem:[%s184 + $0x540] sm:$0xff] %vm890, %v722
        %1060 = vst.msk [vmem:[%s184 + $0x548] sm:$0xff] %vm890, %v723
        %1061 = vst.msk [vmem:[%s184 + $0x550] sm:$0xff] %vm890, %v724
        %1062 = vst.msk [vmem:[%s184 + $0x558] sm:$0xff] %vm890, %v725
        %1063 = vst.msk [vmem:[%s184 + $0x560] sm:$0xff] %vm890, %v726
        %1064 = vst.msk [vmem:[%s184 + $0x568] sm:$0xff] %vm890, %v727
        %1065 = vst.msk [vmem:[%s184 + $0x570] sm:$0xff] %vm890, %v728
        %1066 = vst.msk [vmem:[%s184 + $0x578] sm:$0xff] %vm890, %v729
        %1067 = vst.msk [vmem:[%s184 + $0x580] sm:$0xff] %vm890, %v746
        %1068 = vst.msk [vmem:[%s184 + $0x588] sm:$0xff] %vm890, %v747
        %1069 = vst.msk [vmem:[%s184 + $0x590] sm:$0xff] %vm890, %v748
        %1070 = vst.msk [vmem:[%s184 + $0x598] sm:$0xff] %vm890, %v749
        %1071 = vst.msk [vmem:[%s184 + $0x5a0] sm:$0xff] %vm890, %v750
        %1072 = vst.msk [vmem:[%s184 + $0x5a8] sm:$0xff] %vm890, %v751
        %1073 = vst.msk [vmem:[%s184 + $0x5b0] sm:$0xff] %vm890, %v752
        %1074 = vst.msk [vmem:[%s184 + $0x5b8] sm:$0xff] %vm890, %v753
        %1075 = vst.msk [vmem:[%s184 + $0x5c0] sm:$0xff] %vm890, %v754
        %1076 = vst.msk [vmem:[%s184 + $0x5c8] sm:$0xff] %vm890, %v755
        %1077 = vst.msk [vmem:[%s184 + $0x5d0] sm:$0xff] %vm890, %v756
        %1078 = vst.msk [vmem:[%s184 + $0x5d8] sm:$0xff] %vm890, %v757
        %1079 = vst.msk [vmem:[%s184 + $0x5e0] sm:$0xff] %vm890, %v758
        %1080 = vst.msk [vmem:[%s184 + $0x5e8] sm:$0xff] %vm890, %v759
        %1081 = vst.msk [vmem:[%s184 + $0x5f0] sm:$0xff] %vm890, %v760
        %1082 = vst.msk [vmem:[%s184 + $0x5f8] sm:$0xff] %vm890, %v761
        %1083 = vst.msk [vmem:[%s184 + $0x600] sm:$0xff] %vm890, %v778
        %1084 = vst.msk [vmem:[%s184 + $0x608] sm:$0xff] %vm890, %v779
        %1085 = vst.msk [vmem:[%s184 + $0x610] sm:$0xff] %vm890, %v780
        %1086 = vst.msk [vmem:[%s184 + $0x618] sm:$0xff] %vm890, %v781
        %1087 = vst.msk [vmem:[%s184 + $0x620] sm:$0xff] %vm890, %v782
        %1088 = vst.msk [vmem:[%s184 + $0x628] sm:$0xff] %vm890, %v783
        %1089 = vst.msk [vmem:[%s184 + $0x630] sm:$0xff] %vm890, %v784
        %1090 = vst.msk [vmem:[%s184 + $0x638] sm:$0xff] %vm890, %v785
        %1091 = vst.msk [vmem:[%s184 + $0x640] sm:$0xff] %vm890, %v786
        %1092 = vst.msk [vmem:[%s184 + $0x648] sm:$0xff] %vm890, %v787
        %1093 = vst.msk [vmem:[%s184 + $0x650] sm:$0xff] %vm890, %v788
        %1094 = vst.msk [vmem:[%s184 + $0x658] sm:$0xff] %vm890, %v789
        %1095 = vst.msk [vmem:[%s184 + $0x660] sm:$0xff] %vm890, %v790
        %1096 = vst.msk [vmem:[%s184 + $0x668] sm:$0xff] %vm890, %v791
        %1097 = vst.msk [vmem:[%s184 + $0x670] sm:$0xff] %vm890, %v792
        %1098 = vst.msk [vmem:[%s184 + $0x678] sm:$0xff] %vm890, %v793
        %1099 = vst.msk [vmem:[%s184 + $0x680] sm:$0xff] %vm890, %v810
        %1100 = vst.msk [vmem:[%s184 + $0x688] sm:$0xff] %vm890, %v811
        %1101 = vst.msk [vmem:[%s184 + $0x690] sm:$0xff] %vm890, %v812
        %1102 = vst.msk [vmem:[%s184 + $0x698] sm:$0xff] %vm890, %v813
        %1103 = vst.msk [vmem:[%s184 + $0x6a0] sm:$0xff] %vm890, %v814
        %1104 = vst.msk [vmem:[%s184 + $0x6a8] sm:$0xff] %vm890, %v815
        %1105 = vst.msk [vmem:[%s184 + $0x6b0] sm:$0xff] %vm890, %v816
        %1106 = vst.msk [vmem:[%s184 + $0x6b8] sm:$0xff] %vm890, %v817
        %1107 = vst.msk [vmem:[%s184 + $0x6c0] sm:$0xff] %vm890, %v818
        %1108 = vst.msk [vmem:[%s184 + $0x6c8] sm:$0xff] %vm890, %v819
        %1109 = vst.msk [vmem:[%s184 + $0x6d0] sm:$0xff] %vm890, %v820
        %1110 = vst.msk [vmem:[%s184 + $0x6d8] sm:$0xff] %vm890, %v821
        %1111 = vst.msk [vmem:[%s184 + $0x6e0] sm:$0xff] %vm890, %v822
        %1112 = vst.msk [vmem:[%s184 + $0x6e8] sm:$0xff] %vm890, %v823
        %1113 = vst.msk [vmem:[%s184 + $0x6f0] sm:$0xff] %vm890, %v824
        %1114 = vst.msk [vmem:[%s184 + $0x6f8] sm:$0xff] %vm890, %v825
        %1115 = vst.msk [vmem:[%s184 + $0x700] sm:$0xff] %vm890, %v842
        %1116 = vst.msk [vmem:[%s184 + $0x708] sm:$0xff] %vm890, %v843
        %1117 = vst.msk [vmem:[%s184 + $0x710] sm:$0xff] %vm890, %v844
        %1118 = vst.msk [vmem:[%s184 + $0x718] sm:$0xff] %vm890, %v845
        %1119 = vst.msk [vmem:[%s184 + $0x720] sm:$0xff] %vm890, %v846
        %1120 = vst.msk [vmem:[%s184 + $0x728] sm:$0xff] %vm890, %v847
        %1121 = vst.msk [vmem:[%s184 + $0x730] sm:$0xff] %vm890, %v848
        %1122 = vst.msk [vmem:[%s184 + $0x738] sm:$0xff] %vm890, %v849
        %1123 = vst.msk [vmem:[%s184 + $0x740] sm:$0xff] %vm890, %v850
        %1124 = vst.msk [vmem:[%s184 + $0x748] sm:$0xff] %vm890, %v851
        %1125 = vst.msk [vmem:[%s184 + $0x750] sm:$0xff] %vm890, %v852
        %1126 = vst.msk [vmem:[%s184 + $0x758] sm:$0xff] %vm890, %v853
        %1127 = vst.msk [vmem:[%s184 + $0x760] sm:$0xff] %vm890, %v854
        %1128 = vst.msk [vmem:[%s184 + $0x768] sm:$0xff] %vm890, %v855
        %1129 = vst.msk [vmem:[%s184 + $0x770] sm:$0xff] %vm890, %v856
        %1130 = vst.msk [vmem:[%s184 + $0x778] sm:$0xff] %vm890, %v857
        %1131 = vst.msk [vmem:[%s184 + $0x780] sm:$0xff] %vm890, %v874
        %1132 = vst.msk [vmem:[%s184 + $0x788] sm:$0xff] %vm890, %v875
        %1133 = vst.msk [vmem:[%s184 + $0x790] sm:$0xff] %vm890, %v876
        %1134 = vst.msk [vmem:[%s184 + $0x798] sm:$0xff] %vm890, %v877
        %1135 = vst.msk [vmem:[%s184 + $0x7a0] sm:$0xff] %vm890, %v878
        %1136 = vst.msk [vmem:[%s184 + $0x7a8] sm:$0xff] %vm890, %v879
        %1137 = vst.msk [vmem:[%s184 + $0x7b0] sm:$0xff] %vm890, %v880
        %1138 = vst.msk [vmem:[%s184 + $0x7b8] sm:$0xff] %vm890, %v881
        %1139 = vst.msk [vmem:[%s184 + $0x7c0] sm:$0xff] %vm890, %v882
        %1140 = vst.msk [vmem:[%s184 + $0x7c8] sm:$0xff] %vm890, %v883
        %1141 = vst.msk [vmem:[%s184 + $0x7d0] sm:$0xff] %vm890, %v884
        %1142 = vst.msk [vmem:[%s184 + $0x7d8] sm:$0xff] %vm890, %v885
        %1143 = vst.msk [vmem:[%s184 + $0x7e0] sm:$0xff] %vm890, %v886
        %1144 = vst.msk [vmem:[%s184 + $0x7e8] sm:$0xff] %vm890, %v887
        %1145 = vst.msk [vmem:[%s184 + $0x7f0] sm:$0xff] %vm890, %v888
        %1146 = vst.msk [vmem:[%s184 + $0x7f8] sm:$0xff] %vm890, %v889
        %s1147 = smul.u32 256, %s22
        %p1148 = scmp.lt.s32.totalorder %s20, 1
        %s1149 = scalar_select %p1148, %s20, 1
        %p1150 = scmp.lt.s32.totalorder %s1147, 255
        %s1151 = scalar_select %p1150, %s1147, 255
        %p1152 = scmp.lt.s32.totalorder %s21, 0
        %s1153 = scalar_select %p1152, %s21, 0
        %s1154 = sadd.s32 %s1153, %s1151
        %s1155 = smul.addr %s1149, 256
        %s1156 = sadd.s32 %s1154, %s1155
        %s1157 = smul.addr %s1156, 8
        %s1158 = scalar_lea.vmem %s1, %s1157
        // Predicated region
        $region29: #{tpu_custom_call.1} parent=23 // pred_check
          %p1159 = pneg %p86
        $region30: #{tpu_custom_call.1} parent=23 // pred_check_branch
          %1161 = sbr.rel (%p1159) target = $region32
        $region31: #{tpu_custom_call.1} parent=23 // pred_region
          %s1162 = smul.u32 256, %s22
        $region32: #{tpu_custom_call.1} parent=23 // pred_fallthru
          _
      $region24: #{tpu_custom_call.1} parent=5 // pred_fallthru
        _
      %p1163 = scmp.le.s32.totalorder 2, %s10
      // Predicated region
      $region33: #{tpu_custom_call.1} parent=5 // pred_check
        %p1164 = pneg %p1163
      $region34: #{tpu_custom_call.1} parent=5 // pred_check_branch
        %1166 = sbr.rel (%p1164) target = $region36
      $region35: #{tpu_custom_call.1} parent=5 // pred_region
        %s1167 = ssub.s32 %s10, 2
        // Predicated region
        $region37: #{tpu_custom_call.1} parent=35 // pred_check
          %p1168 = pneg %p92
        $region38: #{tpu_custom_call.1} parent=35 // pred_check_branch
          %1170 = sbr.rel (%p1168) target = $region40
        $region39: #{tpu_custom_call.1} parent=35 // pred_region
          %s1171 = smul.u32 256, %s25
          %p1172 = scmp.lt.s32.totalorder %s23, 1
          %s1173 = scalar_select %p1172, %s23, 1
          %p1174 = scmp.lt.s32.totalorder %s1171, 255
          %s1175 = scalar_select %p1174, %s1171, 255
          %p1176 = scmp.lt.s32.totalorder %s24, 0
          %s1177 = scalar_select %p1176, %s24, 0
          %s1178 = sadd.s32 %s1177, %s1175
          %s1179 = smul.addr %s1173, 256
          %s1180 = sadd.s32 %s1178, %s1179
          %s1181 = smul.addr %s1180, 8
          %s1182 = scalar_lea.vmem %s1, %s1181
        $region40: #{tpu_custom_call.1} parent=35 // pred_fallthru
          _
      $region36: #{tpu_custom_call.1} parent=5 // pred_fallthru
        _
    $region6: #{tpu_custom_call.1} parent=1 // loop_footer
      %s14 = sadd.s32 1, %s10
    $region7: #{tpu_custom_call.1} parent=1 // loop_footer_branch
      %9 = sbr.rel target = $region3
    $region8: #{tpu_custom_call.1} parent=1 // loop_exit
      _
    %1183 = vsyncpa [#allocation3], 1
    %s1184 = scalar_lea.sflag [#allocation3], 1
    %1185 = vsyncpa %s1184, 1

</llo_original>
